<compile_context>
chip_gen: v7x
topology: tpu7x:2x2x1
jax: 0.10.0
libtpu: 0.0.40
codegen_flags: <defaults>
</compile_context>

<pallas_src>
import functools

import numpy as np
import jax
import jax.numpy as jnp
from jax.experimental import pallas as pl
from jax.experimental.pallas import tpu as pltpu


EPS = 1e-5  # nn.InstanceNorm1d default


# ------------------------------ Pallas kernel -------------------------------

def conv_block_kernel(x_ref, w_ref, b_ref, *rest, lout, n_phase, l_true,
                      normalize_input, fuse_pool, eps):
    """One fused conv layer (per batch element, per Cout tile).

    x_ref:    (nrows, s*Cin)     f32 folded input slab for this batch element.
    w_ref:    (R, s*Cin, tn)     bf16 folded weights (R = ceil(K/s), zero-padded taps).
    b_ref:    (1, tn)            f32 bias.
    pool_ref: (P, lout)          f32 exact AdaptiveAvgPool1d matrix (last layer only).
    o_ref:    (lout|P, tn)       f32 output tile.
    """
    if fuse_pool:
        pool_ref, o_ref = rest
    else:
        (o_ref,) = rest

    n_tap, cin_f, tn = w_ref.shape
    cin = cin_f // n_phase
    wv = w_ref[...]                                          # (R, s*Cin, tn) bf16

    if normalize_input:
        # Fused norm0: exact per-(batch, input-channel) stats over the TRUE length l_true.
        # Zero-padded rows of the folded slab contribute nothing to the sums, so summing the
        # whole slab and dividing by l_true reproduces InstanceNorm1d exactly.
        xs = x_ref[...]                                      # (nrows, s*Cin) f32
        csum = jnp.sum(xs, axis=0, keepdims=True)            # (1, s*Cin)
        csq = jnp.sum(xs * xs, axis=0, keepdims=True)
        s_c = csum[:, 0:cin]
        q_c = csq[:, 0:cin]
        for p in range(1, n_phase):                          # combine the stride phases
            s_c = s_c + csum[:, p * cin:(p + 1) * cin]
            q_c = q_c + csq[:, p * cin:(p + 1) * cin]
        mean = s_c / float(l_true)
        var = jnp.maximum(q_c / float(l_true) - mean * mean, 0.0)
        inv = jax.lax.rsqrt(var + eps)
        if n_phase > 1:
            mean_f = jnp.concatenate([mean] * n_phase, axis=1)   # back to (1, s*Cin)
            inv_f = jnp.concatenate([inv] * n_phase, axis=1)
        else:
            mean_f, inv_f = mean, inv

    # Conv as an accumulated sum over ceil(K/s) folded taps: contiguous sublane slices of the
    # VMEM-resident slab (no strided access, no im2col in HBM), bf16 operands, f32 MXU acc.
    acc = jnp.zeros((lout, tn), jnp.float32)
    for r in range(n_tap):                                   # small & static -> unrolled
        tap = x_ref[pl.ds(r, lout), :]                       # (lout, s*Cin) f32
        if normalize_input:
            tap = (tap - mean_f) * inv_f
        acc = acc + jnp.dot(tap.astype(jnp.bfloat16), wv[r],
                            preferred_element_type=jnp.float32)

    # Epilogue: bias + ReLU + InstanceNorm over the length axis, all in f32 (rides the
    # VPU/XLU/EUP slots that are idle under the MXU-bound matmuls).
    y = jnp.maximum(acc + b_ref[...], 0.0)                   # (lout, tn)
    m = jnp.mean(y, axis=0, keepdims=True)
    v = jnp.mean(jnp.square(y - m), axis=0, keepdims=True)
    y = (y - m) * jax.lax.rsqrt(v + eps)

    if fuse_pool:
        # Exact AdaptiveAvgPool1d fused as a small matmul; output already (P, channels).
        y = jnp.dot(pool_ref[...], y, preferred_element_type=jnp.float32)
    o_ref[...] = y.astype(o_ref.dtype)


# ------------------------------ layer wrapper --------------------------------

def _cout_tile(cout):
    # MXU-friendly output-channel tiles (256-aligned preferred, 128 fallback); full channel
    # count for small configs where everything fits easily.
    if cout > 256 and cout % 256 == 0:
        return 256
    if cout > 128 and cout % 128 == 0:
        return 128
    return cout


def conv_block_layer(x, w, b, stride, *, normalize_input, pool_mat=None, eps=EPS):
    # x: (B, L, Cin) f32 NLC; w: (Cout, Cin, K); b: (Cout,)
    B, L, Cin = x.shape
    Cout, Cin2, K = w.shape
    assert Cin == Cin2
    Lout = (L - K) // stride + 1
    R = -(-K // stride)                 # ceil(K / stride) folded taps
    nrows = -(-L // stride)             # folded length (covers all conv reads + norm0 stats)
    Lpad = nrows * stride
    cin_f = stride * Cin

    # Fold the stride into the channel axis. When L % stride == 0 this is a free row-major
    # reshape; otherwise a single zero-pad of at most stride-1 rows.
    if Lpad > L:
        x = jnp.pad(x, ((0, 0), (0, Lpad - L), (0, 0)))
    x_fold = x.reshape(B, nrows, cin_f)

    # One-time param repacking: folded-tap major, bf16 operands (f32 accumulation in-kernel).
    w_t = jnp.transpose(w, (2, 1, 0))                        # (K, Cin, Cout)
    if R * stride > K:
        w_t = jnp.pad(w_t, ((0, R * stride - K), (0, 0), (0, 0)))
    w_fold = w_t.reshape(R, cin_f, Cout).astype(jnp.bfloat16)
    b2 = b.reshape(1, Cout).astype(jnp.float32)

    tn = _cout_tile(Cout)
    n_tiles = Cout // tn
    fuse_pool = pool_mat is not None
    out_rows = int(pool_mat.shape[0]) if fuse_pool else Lout

    kernel = functools.partial(conv_block_kernel, lout=Lout, n_phase=stride,
                               l_true=L, normalize_input=normalize_input,
                               fuse_pool=fuse_pool, eps=eps)

    in_specs = [
        pl.BlockSpec((None, nrows, cin_f), lambda bi, j: (bi, 0, 0)),  # constant over j
        pl.BlockSpec((R, cin_f, tn), lambda bi, j: (0, 0, j)),
        pl.BlockSpec((1, tn), lambda bi, j: (0, j)),
    ]
    args = [x_fold, w_fold, b2]
    if fuse_pool:
        P = int(pool_mat.shape[0])
        in_specs.append(pl.BlockSpec((P, Lout), lambda bi, j: (0, 0)))
        args.append(pool_mat)

    flops = 2 * B * Lout * R * cin_f * Cout
    if fuse_pool:
        flops += 2 * B * out_rows * Lout * Cout
    bytes_accessed = (B * nrows * cin_f * 4 + R * cin_f * Cout * 2 + Cout * 4
                      + B * out_rows * Cout * 4
                      + (out_rows * Lout * 4 if fuse_pool else 0))

    return pl.pallas_call(
        kernel,
        out_shape=jax.ShapeDtypeStruct((B, out_rows, Cout), jnp.float32),
        grid=(B, n_tiles),
        in_specs=in_specs,
        out_specs=pl.BlockSpec((None, out_rows, tn), lambda bi, j: (bi, 0, j)),
        compiler_params=pltpu.CompilerParams(
            dimension_semantics=("parallel", "parallel"),
            vmem_limit_bytes=32 * 1024 * 1024),
        cost_estimate=pl.CostEstimate(
            flops=int(flops),
            transcendentals=int(B * (Cout + (Cin if normalize_input else 0))),
            bytes_accessed=int(bytes_accessed)),
    )(*args)


# --------------------------------- forward -----------------------------------

def adaptive_pool_matrix(L, P):
    # Exact nn.AdaptiveAvgPool1d bins: [floor(i*L/P), ceil((i+1)*L/P)) -> (P, L) matrix.
    m = np.zeros((P, L), dtype=np.float32)
    for i in range(P):
        start = (i * L) // P
        end = -((-(i + 1) * L) // P)
        m[i, start:end] = 1.0 / (end - start)
    return jnp.asarray(m)


@functools.partial(jax.jit, static_argnums=(2, 3))
def conv1d_embed_forward(x, params, strides, pooling_size):
    # x: (B, C0, L) NCL (PyTorch layout). Single layout change of the raw input (the smallest
    # tensor in the net); all activations afterwards stay NLC so no per-layer transposes.
    x = jnp.transpose(x, (0, 2, 1))                          # (B, L, C0)
    n = len(params)
    for i, ((w, b), s) in enumerate(zip(params, strides)):
        K = w.shape[2]
        Lout = (x.shape[1] - K) // s + 1
        pool_mat = adaptive_pool_matrix(Lout, pooling_size) if i == n - 1 else None
        x = conv_block_layer(x, w, b, s, normalize_input=(i == 0), pool_mat=pool_mat)
    return x                                                 # (B, pooling_size, C_last)


def init_params(key, in_channels, layers, kernel_sizes):
    # Deterministic PyTorch-style uniform(-1/sqrt(fan_in), 1/sqrt(fan_in)) init.
    params = []
    cin = in_channels
    for cout, k in zip(layers, kernel_sizes):
        key, kw, kb = jax.random.split(key, 3)
        scale = 1.0 / np.sqrt(cin * k)
        w = jax.random.uniform(kw, (cout, cin, k), jnp.float32, -scale, scale)
        b = jax.random.uniform(kb, (cout,), jnp.float32, -scale, scale)
        params.append((w, b))
        cin = cout
    return tuple(params)


# --------------------------- pure-JAX references ------------------------------

def ref_forward(x, params, strides, pooling_size, conv_dtype=jnp.float32):
    def inorm(v, eps=EPS):
        m = v.mean(-1, keepdims=True)
        var = ((v - m) ** 2).mean(-1, keepdims=True)
        return (v - m) * jax.lax.rsqrt(var + eps)

    def conv(v, w, b, s):
        y = jax.lax.conv_general_dilated(
            v.astype(conv_dtype), w.astype(conv_dtype), (s,), "VALID",
            dimension_numbers=("NCH", "OIH", "NCH"),
            preferred_element_type=jnp.float32)
        return y + b[None, :, None]

    x = inorm(x)
    for (w, b), s in zip(params, strides):
        x = inorm(jnp.maximum(conv(x, w, b, s), 0.0))
    L = x.shape[-1]
    x = jnp.einsum("bcl,pl->bcp", x, adaptive_pool_matrix(L, pooling_size))
    return x.transpose(0, 2, 1)


# ----------------------------------- main -------------------------------------

if __name__ == "__main__":
    # Small config (the module accepts these via kwargs); default would be
    # in_channels=70, layers=[128,256,512,1024], kernels=[32,16,8,4], strides=[4,4,2,2].
    B, C0, L = 2, 4, 64
    layers = [16, 32, 32, 64]
    kernel_sizes = [8, 4, 4, 2]
    strides = (2, 2, 1, 1)
    pooling_size = 8

    key = jax.random.PRNGKey(0)
    kx, kp = jax.random.split(key)
    x = jax.random.normal(kx, (B, C0, L), jnp.float32)
    params = init_params(kp, C0, layers, kernel_sizes)

    out = conv1d_embed_forward(x, params, strides, pooling_size)
    out = jax.block_until_ready(out)
    assert out.shape == (B, pooling_size, layers[-1]), out.shape
    assert bool(jnp.all(jnp.isfinite(out)))

    # Tight structural check vs a reference that uses the same bf16-operand / f32-accum conv,
    # plus a looser sanity check vs the pure-f32 PyTorch-semantics reference.
    ref_bf16 = jax.block_until_ready(
        ref_forward(x, params, strides, pooling_size, conv_dtype=jnp.bfloat16))
    ref_f32 = jax.block_until_ready(
        ref_forward(x, params, strides, pooling_size, conv_dtype=jnp.float32))
    err_bf16 = float(jnp.max(jnp.abs(out - ref_bf16)))
    err_f32 = float(jnp.max(jnp.abs(out - ref_f32)))
    assert err_bf16 < 5e-2, f"mismatch vs bf16-operand reference: {err_bf16}"
    assert err_f32 < 3e-1, f"mismatch vs f32 reference: {err_f32}"

    print("KERNEL_OK")
</pallas_src>

<mosaic_0001>
module attributes {stable_mosaic.version = 11 : i64} {
  func.func @conv_block_kernel(%arg0: i32, %arg1: i32, %arg2: memref<1x32x8xf32, #tpu.memory_space<vmem>>, %arg3: memref<4x8x16xbf16, #tpu.memory_space<vmem>>, %arg4: memref<1x16xf32, #tpu.memory_space<vmem>>, %arg5: memref<1x29x16xf32, #tpu.memory_space<vmem>>) attributes {dimension_semantics = [#tpu.dimension_semantics<parallel>, #tpu.dimension_semantics<parallel>], iteration_bounds = array<i64: 2, 1>, scalar_prefetch = 0 : i64, scratch_operands = 0 : i64, tpu.core_type = #tpu.core_type<tc>, window_params = [{transform_indices = @transform_0, window_bounds = array<i64: 1, 32, 8>}, {transform_indices = @transform_1, window_bounds = array<i64: 4, 8, 16>}, {transform_indices = @transform_2, window_bounds = array<i64: 1, 16>}, {transform_indices = @transform_3, window_bounds = array<i64: 1, 29, 16>}]} {
    %c0 = arith.constant 0 : index
    %c0_0 = arith.constant 0 : index
    %c0_1 = arith.constant 0 : index
    %0 = vector.load %arg3[%c0, %c0_0, %c0_1] : memref<4x8x16xbf16, #tpu.memory_space<vmem>>, vector<4x8x16xbf16>
    %c0_2 = arith.constant 0 : index
    %c0_3 = arith.constant 0 : index
    %c0_4 = arith.constant 0 : index
    %1 = vector.load %arg2[%c0_2, %c0_3, %c0_4] : memref<1x32x8xf32, #tpu.memory_space<vmem>>, vector<1x32x8xf32>
    %2 = vector.shape_cast %1 : vector<1x32x8xf32> to vector<32x8xf32>
    %cst = arith.constant dense<0.000000e+00> : vector<8xf32>
    %3 = vector.multi_reduction <add>, %2, %cst [0] : vector<32x8xf32> to vector<8xf32>
    %4 = vector.shape_cast %3 : vector<8xf32> to vector<1x8xf32>
    %5 = arith.mulf %2, %2 : vector<32x8xf32>
    %cst_5 = arith.constant dense<0.000000e+00> : vector<8xf32>
    %6 = vector.multi_reduction <add>, %5, %cst_5 [0] : vector<32x8xf32> to vector<8xf32>
    %7 = vector.shape_cast %6 : vector<8xf32> to vector<1x8xf32>
    %8 = vector.extract_strided_slice %4 {offsets = [0, 0], sizes = [1, 4], strides = [1, 1]} : vector<1x8xf32> to vector<1x4xf32>
    %9 = vector.extract_strided_slice %7 {offsets = [0, 0], sizes = [1, 4], strides = [1, 1]} : vector<1x8xf32> to vector<1x4xf32>
    %10 = vector.extract_strided_slice %4 {offsets = [0, 4], sizes = [1, 4], strides = [1, 1]} : vector<1x8xf32> to vector<1x4xf32>
    %11 = arith.addf %8, %10 : vector<1x4xf32>
    %12 = vector.extract_strided_slice %7 {offsets = [0, 4], sizes = [1, 4], strides = [1, 1]} : vector<1x8xf32> to vector<1x4xf32>
    %13 = arith.addf %9, %12 : vector<1x4xf32>
    %cst_6 = arith.constant 6.400000e+01 : f32
    %14 = vector.broadcast %cst_6 : f32 to vector<1x4xf32>
    %15 = arith.divf %11, %14 : vector<1x4xf32>
    %cst_7 = arith.constant 6.400000e+01 : f32
    %16 = vector.broadcast %cst_7 : f32 to vector<1x4xf32>
    %17 = arith.divf %13, %16 : vector<1x4xf32>
    %18 = arith.mulf %15, %15 : vector<1x4xf32>
    %19 = arith.subf %17, %18 : vector<1x4xf32>
    %cst_8 = arith.constant 0.000000e+00 : f32
    %20 = vector.broadcast %cst_8 : f32 to vector<1x4xf32>
    %21 = arith.maximumf %19, %20 : vector<1x4xf32>
    %cst_9 = arith.constant 9.99999974E-6 : f32
    %22 = vector.broadcast %cst_9 : f32 to vector<1x4xf32>
    %23 = arith.addf %21, %22 : vector<1x4xf32>
    %24 = math.rsqrt %23 : vector<1x4xf32>
    %25 = tpu.concatenate %15, %15 in 1 : vector<1x4xf32>, vector<1x4xf32> -> vector<1x8xf32>
    %26 = tpu.concatenate %24, %24 in 1 : vector<1x4xf32>, vector<1x4xf32> -> vector<1x8xf32>
    %cst_10 = arith.constant 0.000000e+00 : f32
    %27 = vector.broadcast %cst_10 : f32 to vector<29x16xf32>
    %c0_11 = arith.constant 0 : index
    %c0_12 = arith.constant 0 : index
    %c0_13 = arith.constant 0 : index
    %28 = vector.load %arg2[%c0_11, %c0_12, %c0_13] : memref<1x32x8xf32, #tpu.memory_space<vmem>>, vector<1x29x8xf32>
    %29 = vector.shape_cast %28 : vector<1x29x8xf32> to vector<29x8xf32>
    %30 = vector.broadcast %25 : vector<1x8xf32> to vector<29x8xf32>
    %31 = arith.subf %29, %30 : vector<29x8xf32>
    %32 = vector.broadcast %26 : vector<1x8xf32> to vector<29x8xf32>
    %33 = arith.mulf %31, %32 : vector<29x8xf32>
    %34 = arith.truncf %33 : vector<29x8xf32> to vector<29x8xbf16>
    %35 = vector.extract_strided_slice %0 {offsets = [0, 0, 0], sizes = [1, 8, 16], strides = [1, 1, 1]} : vector<4x8x16xbf16> to vector<1x8x16xbf16>
    %36 = vector.shape_cast %35 : vector<1x8x16xbf16> to vector<8x16xbf16>
    %cst_14 = arith.constant dense<0.000000e+00> : vector<29x16xf32>
    %37 = tpu.matmul %34, %36, %cst_14 {dimension_numbers = #tpu.dot_dimension_numbers<[1], [0], [0], [1], [0, 0, 1, 1], [], []>} : vector<29x8xbf16>, vector<8x16xbf16>, vector<29x16xf32> -> vector<29x16xf32>
    %38 = arith.addf %27, %37 : vector<29x16xf32>
    %c0_15 = arith.constant 0 : index
    %c1 = arith.constant 1 : index
    %c0_16 = arith.constant 0 : index
    %39 = vector.load %arg2[%c0_15, %c1, %c0_16] : memref<1x32x8xf32, #tpu.memory_space<vmem>>, vector<1x29x8xf32>
    %40 = vector.shape_cast %39 : vector<1x29x8xf32> to vector<29x8xf32>
    %41 = vector.broadcast %25 : vector<1x8xf32> to vector<29x8xf32>
    %42 = arith.subf %40, %41 : vector<29x8xf32>
    %43 = vector.broadcast %26 : vector<1x8xf32> to vector<29x8xf32>
    %44 = arith.mulf %42, %43 : vector<29x8xf32>
    %45 = arith.truncf %44 : vector<29x8xf32> to vector<29x8xbf16>
    %46 = vector.extract_strided_slice %0 {offsets = [1, 0, 0], sizes = [1, 8, 16], strides = [1, 1, 1]} : vector<4x8x16xbf16> to vector<1x8x16xbf16>
    %47 = vector.shape_cast %46 : vector<1x8x16xbf16> to vector<8x16xbf16>
    %cst_17 = arith.constant dense<0.000000e+00> : vector<29x16xf32>
    %48 = tpu.matmul %45, %47, %cst_17 {dimension_numbers = #tpu.dot_dimension_numbers<[1], [0], [0], [1], [0, 0, 1, 1], [], []>} : vector<29x8xbf16>, vector<8x16xbf16>, vector<29x16xf32> -> vector<29x16xf32>
    %49 = arith.addf %38, %48 : vector<29x16xf32>
    %c0_18 = arith.constant 0 : index
    %c2 = arith.constant 2 : index
    %c0_19 = arith.constant 0 : index
    %50 = vector.load %arg2[%c0_18, %c2, %c0_19] : memref<1x32x8xf32, #tpu.memory_space<vmem>>, vector<1x29x8xf32>
    %51 = vector.shape_cast %50 : vector<1x29x8xf32> to vector<29x8xf32>
    %52 = vector.broadcast %25 : vector<1x8xf32> to vector<29x8xf32>
    %53 = arith.subf %51, %52 : vector<29x8xf32>
    %54 = vector.broadcast %26 : vector<1x8xf32> to vector<29x8xf32>
    %55 = arith.mulf %53, %54 : vector<29x8xf32>
    %56 = arith.truncf %55 : vector<29x8xf32> to vector<29x8xbf16>
    %57 = vector.extract_strided_slice %0 {offsets = [2, 0, 0], sizes = [1, 8, 16], strides = [1, 1, 1]} : vector<4x8x16xbf16> to vector<1x8x16xbf16>
    %58 = vector.shape_cast %57 : vector<1x8x16xbf16> to vector<8x16xbf16>
    %cst_20 = arith.constant dense<0.000000e+00> : vector<29x16xf32>
    %59 = tpu.matmul %56, %58, %cst_20 {dimension_numbers = #tpu.dot_dimension_numbers<[1], [0], [0], [1], [0, 0, 1, 1], [], []>} : vector<29x8xbf16>, vector<8x16xbf16>, vector<29x16xf32> -> vector<29x16xf32>
    %60 = arith.addf %49, %59 : vector<29x16xf32>
    %c0_21 = arith.constant 0 : index
    %c3 = arith.constant 3 : index
    %c0_22 = arith.constant 0 : index
    %61 = vector.load %arg2[%c0_21, %c3, %c0_22] : memref<1x32x8xf32, #tpu.memory_space<vmem>>, vector<1x29x8xf32>
    %62 = vector.shape_cast %61 : vector<1x29x8xf32> to vector<29x8xf32>
    %63 = vector.broadcast %25 : vector<1x8xf32> to vector<29x8xf32>
    %64 = arith.subf %62, %63 : vector<29x8xf32>
    %65 = vector.broadcast %26 : vector<1x8xf32> to vector<29x8xf32>
    %66 = arith.mulf %64, %65 : vector<29x8xf32>
    %67 = arith.truncf %66 : vector<29x8xf32> to vector<29x8xbf16>
    %68 = vector.extract_strided_slice %0 {offsets = [3, 0, 0], sizes = [1, 8, 16], strides = [1, 1, 1]} : vector<4x8x16xbf16> to vector<1x8x16xbf16>
    %69 = vector.shape_cast %68 : vector<1x8x16xbf16> to vector<8x16xbf16>
    %cst_23 = arith.constant dense<0.000000e+00> : vector<29x16xf32>
    %70 = tpu.matmul %67, %69, %cst_23 {dimension_numbers = #tpu.dot_dimension_numbers<[1], [0], [0], [1], [0, 0, 1, 1], [], []>} : vector<29x8xbf16>, vector<8x16xbf16>, vector<29x16xf32> -> vector<29x16xf32>
    %71 = arith.addf %60, %70 : vector<29x16xf32>
    %c0_24 = arith.constant 0 : index
    %c0_25 = arith.constant 0 : index
    %72 = vector.load %arg4[%c0_24, %c0_25] : memref<1x16xf32, #tpu.memory_space<vmem>>, vector<1x16xf32>
    %73 = vector.broadcast %72 : vector<1x16xf32> to vector<29x16xf32>
    %74 = arith.addf %71, %73 : vector<29x16xf32>
    %cst_26 = arith.constant 0.000000e+00 : f32
    %75 = vector.broadcast %cst_26 : f32 to vector<29x16xf32>
    %76 = arith.maximumf %74, %75 : vector<29x16xf32>
    %cst_27 = arith.constant dense<0.000000e+00> : vector<16xf32>
    %77 = vector.multi_reduction <add>, %76, %cst_27 [0] : vector<29x16xf32> to vector<16xf32>
    %78 = vector.shape_cast %77 : vector<16xf32> to vector<1x16xf32>
    %cst_28 = arith.constant 2.900000e+01 : f32
    %79 = vector.broadcast %cst_28 : f32 to vector<1x16xf32>
    %80 = arith.divf %78, %79 : vector<1x16xf32>
    %81 = vector.broadcast %80 : vector<1x16xf32> to vector<29x16xf32>
    %82 = arith.subf %76, %81 : vector<29x16xf32>
    %83 = arith.mulf %82, %82 : vector<29x16xf32>
    %cst_29 = arith.constant dense<0.000000e+00> : vector<16xf32>
    %84 = vector.multi_reduction <add>, %83, %cst_29 [0] : vector<29x16xf32> to vector<16xf32>
    %85 = vector.shape_cast %84 : vector<16xf32> to vector<1x16xf32>
    %cst_30 = arith.constant 2.900000e+01 : f32
    %86 = vector.broadcast %cst_30 : f32 to vector<1x16xf32>
    %87 = arith.divf %85, %86 : vector<1x16xf32>
    %88 = vector.broadcast %80 : vector<1x16xf32> to vector<29x16xf32>
    %89 = arith.subf %76, %88 : vector<29x16xf32>
    %cst_31 = arith.constant 9.99999974E-6 : f32
    %90 = vector.broadcast %cst_31 : f32 to vector<1x16xf32>
    %91 = arith.addf %87, %90 : vector<1x16xf32>
    %92 = math.rsqrt %91 : vector<1x16xf32>
    %93 = vector.broadcast %92 : vector<1x16xf32> to vector<29x16xf32>
    %94 = arith.mulf %89, %93 : vector<29x16xf32>
    %c0_32 = arith.constant 0 : index
    %c0_33 = arith.constant 0 : index
    %c0_34 = arith.constant 0 : index
    %95 = vector.load %arg5[%c0_32, %c0_33, %c0_34] : memref<1x29x16xf32, #tpu.memory_space<vmem>>, vector<1x29x16xf32>
    %96 = vector.shape_cast %95 : vector<1x29x16xf32> to vector<29x16xf32>
    %97 = vector.shape_cast %94 : vector<29x16xf32> to vector<1x29x16xf32>
    tpu.vector_store %arg5[%c0_32, %c0_33, %c0_34], %97 {strides = array<i32>} : memref<1x29x16xf32, #tpu.memory_space<vmem>>, vector<1x29x16xf32>,
    return
  }
  func.func @transform_0(%arg0: i32, %arg1: i32) -> (i32, i32, i32) {
    %c0_i32 = arith.constant 0 : i32
    %c0_i32_0 = arith.constant 0 : i32
    %c0_i32_1 = arith.constant 0 : i32
    return %arg0, %c0_i32, %c0_i32_0 : i32, i32, i32
  }
  func.func @transform_1(%arg0: i32, %arg1: i32) -> (i32, i32, i32) {
    %c0_i32 = arith.constant 0 : i32
    %c0_i32_0 = arith.constant 0 : i32
    %c0_i32_1 = arith.constant 0 : i32
    return %c0_i32, %c0_i32_0, %arg1 : i32, i32, i32
  }
  func.func @transform_2(%arg0: i32, %arg1: i32) -> (i32, i32) {
    %c0_i32 = arith.constant 0 : i32
    %c0_i32_0 = arith.constant 0 : i32
    return %c0_i32, %arg1 : i32, i32
  }
  func.func @transform_3(%arg0: i32, %arg1: i32) -> (i32, i32, i32) {
    %c0_i32 = arith.constant 0 : i32
    %c0_i32_0 = arith.constant 0 : i32
    return %arg0, %c0_i32, %arg1 : i32, i32, i32
  }
}

module attributes {stable_mosaic.version = 11 : i64} {
  func.func @conv_block_kernel(%arg0: i32, %arg1: i32, %arg2: memref<1x15x32xf32, #tpu.memory_space<vmem>>, %arg3: memref<2x32x32xbf16, #tpu.memory_space<vmem>>, %arg4: memref<1x32xf32, #tpu.memory_space<vmem>>, %arg5: memref<1x13x32xf32, #tpu.memory_space<vmem>>) attributes {dimension_semantics = [#tpu.dimension_semantics<parallel>, #tpu.dimension_semantics<parallel>], iteration_bounds = array<i64: 2, 1>, scalar_prefetch = 0 : i64, scratch_operands = 0 : i64, tpu.core_type = #tpu.core_type<tc>, window_params = [{transform_indices = @transform_0, window_bounds = array<i64: 1, 15, 32>}, {transform_indices = @transform_1, window_bounds = array<i64: 2, 32, 32>}, {transform_indices = @transform_2, window_bounds = array<i64: 1, 32>}, {transform_indices = @transform_3, window_bounds = array<i64: 1, 13, 32>}]} {
    %c0 = arith.constant 0 : index
    %c0_0 = arith.constant 0 : index
    %c0_1 = arith.constant 0 : index
    %0 = vector.load %arg3[%c0, %c0_0, %c0_1] : memref<2x32x32xbf16, #tpu.memory_space<vmem>>, vector<2x32x32xbf16>
    %cst = arith.constant 0.000000e+00 : f32
    %1 = vector.broadcast %cst : f32 to vector<13x32xf32>
    %c0_2 = arith.constant 0 : index
    %c0_3 = arith.constant 0 : index
    %c0_4 = arith.constant 0 : index
    %2 = vector.load %arg2[%c0_2, %c0_3, %c0_4] : memref<1x15x32xf32, #tpu.memory_space<vmem>>, vector<1x13x32xf32>
    %3 = vector.shape_cast %2 : vector<1x13x32xf32> to vector<13x32xf32>
    %4 = arith.truncf %3 : vector<13x32xf32> to vector<13x32xbf16>
    %5 = vector.extract_strided_slice %0 {offsets = [0, 0, 0], sizes = [1, 32, 32], strides = [1, 1, 1]} : vector<2x32x32xbf16> to vector<1x32x32xbf16>
    %6 = vector.shape_cast %5 : vector<1x32x32xbf16> to vector<32x32xbf16>
    %cst_5 = arith.constant dense<0.000000e+00> : vector<13x32xf32>
    %7 = tpu.matmul %4, %6, %cst_5 {dimension_numbers = #tpu.dot_dimension_numbers<[1], [0], [0], [1], [0, 0, 1, 1], [], []>} : vector<13x32xbf16>, vector<32x32xbf16>, vector<13x32xf32> -> vector<13x32xf32>
    %8 = arith.addf %1, %7 : vector<13x32xf32>
    %c0_6 = arith.constant 0 : index
    %c1 = arith.constant 1 : index
    %c0_7 = arith.constant 0 : index
    %9 = vector.load %arg2[%c0_6, %c1, %c0_7] : memref<1x15x32xf32, #tpu.memory_space<vmem>>, vector<1x13x32xf32>
    %10 = vector.shape_cast %9 : vector<1x13x32xf32> to vector<13x32xf32>
    %11 = arith.truncf %10 : vector<13x32xf32> to vector<13x32xbf16>
    %12 = vector.extract_strided_slice %0 {offsets = [1, 0, 0], sizes = [1, 32, 32], strides = [1, 1, 1]} : vector<2x32x32xbf16> to vector<1x32x32xbf16>
    %13 = vector.shape_cast %12 : vector<1x32x32xbf16> to vector<32x32xbf16>
    %cst_8 = arith.constant dense<0.000000e+00> : vector<13x32xf32>
    %14 = tpu.matmul %11, %13, %cst_8 {dimension_numbers = #tpu.dot_dimension_numbers<[1], [0], [0], [1], [0, 0, 1, 1], [], []>} : vector<13x32xbf16>, vector<32x32xbf16>, vector<13x32xf32> -> vector<13x32xf32>
    %15 = arith.addf %8, %14 : vector<13x32xf32>
    %c0_9 = arith.constant 0 : index
    %c0_10 = arith.constant 0 : index
    %16 = vector.load %arg4[%c0_9, %c0_10] : memref<1x32xf32, #tpu.memory_space<vmem>>, vector<1x32xf32>
    %17 = vector.broadcast %16 : vector<1x32xf32> to vector<13x32xf32>
    %18 = arith.addf %15, %17 : vector<13x32xf32>
    %cst_11 = arith.constant 0.000000e+00 : f32
    %19 = vector.broadcast %cst_11 : f32 to vector<13x32xf32>
    %20 = arith.maximumf %18, %19 : vector<13x32xf32>
    %cst_12 = arith.constant dense<0.000000e+00> : vector<32xf32>
    %21 = vector.multi_reduction <add>, %20, %cst_12 [0] : vector<13x32xf32> to vector<32xf32>
    %22 = vector.shape_cast %21 : vector<32xf32> to vector<1x32xf32>
    %cst_13 = arith.constant 1.300000e+01 : f32
    %23 = vector.broadcast %cst_13 : f32 to vector<1x32xf32>
    %24 = arith.divf %22, %23 : vector<1x32xf32>
    %25 = vector.broadcast %24 : vector<1x32xf32> to vector<13x32xf32>
    %26 = arith.subf %20, %25 : vector<13x32xf32>
    %27 = arith.mulf %26, %26 : vector<13x32xf32>
    %cst_14 = arith.constant dense<0.000000e+00> : vector<32xf32>
    %28 = vector.multi_reduction <add>, %27, %cst_14 [0] : vector<13x32xf32> to vector<32xf32>
    %29 = vector.shape_cast %28 : vector<32xf32> to vector<1x32xf32>
    %cst_15 = arith.constant 1.300000e+01 : f32
    %30 = vector.broadcast %cst_15 : f32 to vector<1x32xf32>
    %31 = arith.divf %29, %30 : vector<1x32xf32>
    %32 = vector.broadcast %24 : vector<1x32xf32> to vector<13x32xf32>
    %33 = arith.subf %20, %32 : vector<13x32xf32>
    %cst_16 = arith.constant 9.99999974E-6 : f32
    %34 = vector.broadcast %cst_16 : f32 to vector<1x32xf32>
    %35 = arith.addf %31, %34 : vector<1x32xf32>
    %36 = math.rsqrt %35 : vector<1x32xf32>
    %37 = vector.broadcast %36 : vector<1x32xf32> to vector<13x32xf32>
    %38 = arith.mulf %33, %37 : vector<13x32xf32>
    %c0_17 = arith.constant 0 : index
    %c0_18 = arith.constant 0 : index
    %c0_19 = arith.constant 0 : index
    %39 = vector.load %arg5[%c0_17, %c0_18, %c0_19] : memref<1x13x32xf32, #tpu.memory_space<vmem>>, vector<1x13x32xf32>
    %40 = vector.shape_cast %39 : vector<1x13x32xf32> to vector<13x32xf32>
    %41 = vector.shape_cast %38 : vector<13x32xf32> to vector<1x13x32xf32>
    tpu.vector_store %arg5[%c0_17, %c0_18, %c0_19], %41 {strides = array<i32>} : memref<1x13x32xf32, #tpu.memory_space<vmem>>, vector<1x13x32xf32>,
    return
  }
  func.func @transform_0(%arg0: i32, %arg1: i32) -> (i32, i32, i32) {
    %c0_i32 = arith.constant 0 : i32
    %c0_i32_0 = arith.constant 0 : i32
    %c0_i32_1 = arith.constant 0 : i32
    return %arg0, %c0_i32, %c0_i32_0 : i32, i32, i32
  }
  func.func @transform_1(%arg0: i32, %arg1: i32) -> (i32, i32, i32) {
    %c0_i32 = arith.constant 0 : i32
    %c0_i32_0 = arith.constant 0 : i32
    %c0_i32_1 = arith.constant 0 : i32
    return %c0_i32, %c0_i32_0, %arg1 : i32, i32, i32
  }
  func.func @transform_2(%arg0: i32, %arg1: i32) -> (i32, i32) {
    %c0_i32 = arith.constant 0 : i32
    %c0_i32_0 = arith.constant 0 : i32
    return %c0_i32, %arg1 : i32, i32
  }
  func.func @transform_3(%arg0: i32, %arg1: i32) -> (i32, i32, i32) {
    %c0_i32 = arith.constant 0 : i32
    %c0_i32_0 = arith.constant 0 : i32
    return %arg0, %c0_i32, %arg1 : i32, i32, i32
  }
}

module attributes {stable_mosaic.version = 11 : i64} {
  func.func @conv_block_kernel(%arg0: i32, %arg1: i32, %arg2: memref<1x13x32xf32, #tpu.memory_space<vmem>>, %arg3: memref<4x32x32xbf16, #tpu.memory_space<vmem>>, %arg4: memref<1x32xf32, #tpu.memory_space<vmem>>, %arg5: memref<1x10x32xf32, #tpu.memory_space<vmem>>) attributes {dimension_semantics = [#tpu.dimension_semantics<parallel>, #tpu.dimension_semantics<parallel>], iteration_bounds = array<i64: 2, 1>, scalar_prefetch = 0 : i64, scratch_operands = 0 : i64, tpu.core_type = #tpu.core_type<tc>, window_params = [{transform_indices = @transform_0, window_bounds = array<i64: 1, 13, 32>}, {transform_indices = @transform_1, window_bounds = array<i64: 4, 32, 32>}, {transform_indices = @transform_2, window_bounds = array<i64: 1, 32>}, {transform_indices = @transform_3, window_bounds = array<i64: 1, 10, 32>}]} {
    %c0 = arith.constant 0 : index
    %c0_0 = arith.constant 0 : index
    %c0_1 = arith.constant 0 : index
    %0 = vector.load %arg3[%c0, %c0_0, %c0_1] : memref<4x32x32xbf16, #tpu.memory_space<vmem>>, vector<4x32x32xbf16>
    %cst = arith.constant 0.000000e+00 : f32
    %1 = vector.broadcast %cst : f32 to vector<10x32xf32>
    %c0_2 = arith.constant 0 : index
    %c0_3 = arith.constant 0 : index
    %c0_4 = arith.constant 0 : index
    %2 = vector.load %arg2[%c0_2, %c0_3, %c0_4] : memref<1x13x32xf32, #tpu.memory_space<vmem>>, vector<1x10x32xf32>
    %3 = vector.shape_cast %2 : vector<1x10x32xf32> to vector<10x32xf32>
    %4 = arith.truncf %3 : vector<10x32xf32> to vector<10x32xbf16>
    %5 = vector.extract_strided_slice %0 {offsets = [0, 0, 0], sizes = [1, 32, 32], strides = [1, 1, 1]} : vector<4x32x32xbf16> to vector<1x32x32xbf16>
    %6 = vector.shape_cast %5 : vector<1x32x32xbf16> to vector<32x32xbf16>
    %cst_5 = arith.constant dense<0.000000e+00> : vector<10x32xf32>
    %7 = tpu.matmul %4, %6, %cst_5 {dimension_numbers = #tpu.dot_dimension_numbers<[1], [0], [0], [1], [0, 0, 1, 1], [], []>} : vector<10x32xbf16>, vector<32x32xbf16>, vector<10x32xf32> -> vector<10x32xf32>
    %8 = arith.addf %1, %7 : vector<10x32xf32>
    %c0_6 = arith.constant 0 : index
    %c1 = arith.constant 1 : index
    %c0_7 = arith.constant 0 : index
    %9 = vector.load %arg2[%c0_6, %c1, %c0_7] : memref<1x13x32xf32, #tpu.memory_space<vmem>>, vector<1x10x32xf32>
    %10 = vector.shape_cast %9 : vector<1x10x32xf32> to vector<10x32xf32>
    %11 = arith.truncf %10 : vector<10x32xf32> to vector<10x32xbf16>
    %12 = vector.extract_strided_slice %0 {offsets = [1, 0, 0], sizes = [1, 32, 32], strides = [1, 1, 1]} : vector<4x32x32xbf16> to vector<1x32x32xbf16>
    %13 = vector.shape_cast %12 : vector<1x32x32xbf16> to vector<32x32xbf16>
    %cst_8 = arith.constant dense<0.000000e+00> : vector<10x32xf32>
    %14 = tpu.matmul %11, %13, %cst_8 {dimension_numbers = #tpu.dot_dimension_numbers<[1], [0], [0], [1], [0, 0, 1, 1], [], []>} : vector<10x32xbf16>, vector<32x32xbf16>, vector<10x32xf32> -> vector<10x32xf32>
    %15 = arith.addf %8, %14 : vector<10x32xf32>
    %c0_9 = arith.constant 0 : index
    %c2 = arith.constant 2 : index
    %c0_10 = arith.constant 0 : index
    %16 = vector.load %arg2[%c0_9, %c2, %c0_10] : memref<1x13x32xf32, #tpu.memory_space<vmem>>, vector<1x10x32xf32>
    %17 = vector.shape_cast %16 : vector<1x10x32xf32> to vector<10x32xf32>
    %18 = arith.truncf %17 : vector<10x32xf32> to vector<10x32xbf16>
    %19 = vector.extract_strided_slice %0 {offsets = [2, 0, 0], sizes = [1, 32, 32], strides = [1, 1, 1]} : vector<4x32x32xbf16> to vector<1x32x32xbf16>
    %20 = vector.shape_cast %19 : vector<1x32x32xbf16> to vector<32x32xbf16>
    %cst_11 = arith.constant dense<0.000000e+00> : vector<10x32xf32>
    %21 = tpu.matmul %18, %20, %cst_11 {dimension_numbers = #tpu.dot_dimension_numbers<[1], [0], [0], [1], [0, 0, 1, 1], [], []>} : vector<10x32xbf16>, vector<32x32xbf16>, vector<10x32xf32> -> vector<10x32xf32>
    %22 = arith.addf %15, %21 : vector<10x32xf32>
    %c0_12 = arith.constant 0 : index
    %c3 = arith.constant 3 : index
    %c0_13 = arith.constant 0 : index
    %23 = vector.load %arg2[%c0_12, %c3, %c0_13] : memref<1x13x32xf32, #tpu.memory_space<vmem>>, vector<1x10x32xf32>
    %24 = vector.shape_cast %23 : vector<1x10x32xf32> to vector<10x32xf32>
    %25 = arith.truncf %24 : vector<10x32xf32> to vector<10x32xbf16>
    %26 = vector.extract_strided_slice %0 {offsets = [3, 0, 0], sizes = [1, 32, 32], strides = [1, 1, 1]} : vector<4x32x32xbf16> to vector<1x32x32xbf16>
    %27 = vector.shape_cast %26 : vector<1x32x32xbf16> to vector<32x32xbf16>
    %cst_14 = arith.constant dense<0.000000e+00> : vector<10x32xf32>
    %28 = tpu.matmul %25, %27, %cst_14 {dimension_numbers = #tpu.dot_dimension_numbers<[1], [0], [0], [1], [0, 0, 1, 1], [], []>} : vector<10x32xbf16>, vector<32x32xbf16>, vector<10x32xf32> -> vector<10x32xf32>
    %29 = arith.addf %22, %28 : vector<10x32xf32>
    %c0_15 = arith.constant 0 : index
    %c0_16 = arith.constant 0 : index
    %30 = vector.load %arg4[%c0_15, %c0_16] : memref<1x32xf32, #tpu.memory_space<vmem>>, vector<1x32xf32>
    %31 = vector.broadcast %30 : vector<1x32xf32> to vector<10x32xf32>
    %32 = arith.addf %29, %31 : vector<10x32xf32>
    %cst_17 = arith.constant 0.000000e+00 : f32
    %33 = vector.broadcast %cst_17 : f32 to vector<10x32xf32>
    %34 = arith.maximumf %32, %33 : vector<10x32xf32>
    %cst_18 = arith.constant dense<0.000000e+00> : vector<32xf32>
    %35 = vector.multi_reduction <add>, %34, %cst_18 [0] : vector<10x32xf32> to vector<32xf32>
    %36 = vector.shape_cast %35 : vector<32xf32> to vector<1x32xf32>
    %cst_19 = arith.constant 1.000000e+01 : f32
    %37 = vector.broadcast %cst_19 : f32 to vector<1x32xf32>
    %38 = arith.divf %36, %37 : vector<1x32xf32>
    %39 = vector.broadcast %38 : vector<1x32xf32> to vector<10x32xf32>
    %40 = arith.subf %34, %39 : vector<10x32xf32>
    %41 = arith.mulf %40, %40 : vector<10x32xf32>
    %cst_20 = arith.constant dense<0.000000e+00> : vector<32xf32>
    %42 = vector.multi_reduction <add>, %41, %cst_20 [0] : vector<10x32xf32> to vector<32xf32>
    %43 = vector.shape_cast %42 : vector<32xf32> to vector<1x32xf32>
    %cst_21 = arith.constant 1.000000e+01 : f32
    %44 = vector.broadcast %cst_21 : f32 to vector<1x32xf32>
    %45 = arith.divf %43, %44 : vector<1x32xf32>
    %46 = vector.broadcast %38 : vector<1x32xf32> to vector<10x32xf32>
    %47 = arith.subf %34, %46 : vector<10x32xf32>
    %cst_22 = arith.constant 9.99999974E-6 : f32
    %48 = vector.broadcast %cst_22 : f32 to vector<1x32xf32>
    %49 = arith.addf %45, %48 : vector<1x32xf32>
    %50 = math.rsqrt %49 : vector<1x32xf32>
    %51 = vector.broadcast %50 : vector<1x32xf32> to vector<10x32xf32>
    %52 = arith.mulf %47, %51 : vector<10x32xf32>
    %c0_23 = arith.constant 0 : index
    %c0_24 = arith.constant 0 : index
    %c0_25 = arith.constant 0 : index
    %53 = vector.load %arg5[%c0_23, %c0_24, %c0_25] : memref<1x10x32xf32, #tpu.memory_space<vmem>>, vector<1x10x32xf32>
    %54 = vector.shape_cast %53 : vector<1x10x32xf32> to vector<10x32xf32>
    %55 = vector.shape_cast %52 : vector<10x32xf32> to vector<1x10x32xf32>
    tpu.vector_store %arg5[%c0_23, %c0_24, %c0_25], %55 {strides = array<i32>} : memref<1x10x32xf32, #tpu.memory_space<vmem>>, vector<1x10x32xf32>,
    return
  }
  func.func @transform_0(%arg0: i32, %arg1: i32) -> (i32, i32, i32) {
    %c0_i32 = arith.constant 0 : i32
    %c0_i32_0 = arith.constant 0 : i32
    %c0_i32_1 = arith.constant 0 : i32
    return %arg0, %c0_i32, %c0_i32_0 : i32, i32, i32
  }
  func.func @transform_1(%arg0: i32, %arg1: i32) -> (i32, i32, i32) {
    %c0_i32 = arith.constant 0 : i32
    %c0_i32_0 = arith.constant 0 : i32
    %c0_i32_1 = arith.constant 0 : i32
    return %c0_i32, %c0_i32_0, %arg1 : i32, i32, i32
  }
  func.func @transform_2(%arg0: i32, %arg1: i32) -> (i32, i32) {
    %c0_i32 = arith.constant 0 : i32
    %c0_i32_0 = arith.constant 0 : i32
    return %c0_i32, %arg1 : i32, i32
  }
  func.func @transform_3(%arg0: i32, %arg1: i32) -> (i32, i32, i32) {
    %c0_i32 = arith.constant 0 : i32
    %c0_i32_0 = arith.constant 0 : i32
    return %arg0, %c0_i32, %arg1 : i32, i32, i32
  }
}

module attributes {stable_mosaic.version = 11 : i64} {
  func.func @conv_block_kernel(%arg0: i32, %arg1: i32, %arg2: memref<1x10x32xf32, #tpu.memory_space<vmem>>, %arg3: memref<2x32x64xbf16, #tpu.memory_space<vmem>>, %arg4: memref<1x64xf32, #tpu.memory_space<vmem>>, %arg5: memref<8x9xf32, #tpu.memory_space<vmem>>, %arg6: memref<1x8x64xf32, #tpu.memory_space<vmem>>) attributes {dimension_semantics = [#tpu.dimension_semantics<parallel>, #tpu.dimension_semantics<parallel>], iteration_bounds = array<i64: 2, 1>, scalar_prefetch = 0 : i64, scratch_operands = 0 : i64, tpu.core_type = #tpu.core_type<tc>, window_params = [{transform_indices = @transform_0, window_bounds = array<i64: 1, 10, 32>}, {transform_indices = @transform_1, window_bounds = array<i64: 2, 32, 64>}, {transform_indices = @transform_2, window_bounds = array<i64: 1, 64>}, {pipeline_mode = #tpu.pipeline_mode<synchronous>, transform_indices = @transform_3, window_bounds = array<i64: 8, 9>}, {transform_indices = @transform_4, window_bounds = array<i64: 1, 8, 64>}]} {
    %c0 = arith.constant 0 : index
    %c0_0 = arith.constant 0 : index
    %c0_1 = arith.constant 0 : index
    %0 = vector.load %arg3[%c0, %c0_0, %c0_1] : memref<2x32x64xbf16, #tpu.memory_space<vmem>>, vector<2x32x64xbf16>
    %cst = arith.constant 0.000000e+00 : f32
    %1 = vector.broadcast %cst : f32 to vector<9x64xf32>
    %c0_2 = arith.constant 0 : index
    %c0_3 = arith.constant 0 : index
    %c0_4 = arith.constant 0 : index
    %2 = vector.load %arg2[%c0_2, %c0_3, %c0_4] : memref<1x10x32xf32, #tpu.memory_space<vmem>>, vector<1x9x32xf32>
    %3 = vector.shape_cast %2 : vector<1x9x32xf32> to vector<9x32xf32>
    %4 = arith.truncf %3 : vector<9x32xf32> to vector<9x32xbf16>
    %5 = vector.extract_strided_slice %0 {offsets = [0, 0, 0], sizes = [1, 32, 64], strides = [1, 1, 1]} : vector<2x32x64xbf16> to vector<1x32x64xbf16>
    %6 = vector.shape_cast %5 : vector<1x32x64xbf16> to vector<32x64xbf16>
    %cst_5 = arith.constant dense<0.000000e+00> : vector<9x64xf32>
    %7 = tpu.matmul %4, %6, %cst_5 {dimension_numbers = #tpu.dot_dimension_numbers<[1], [0], [0], [1], [0, 0, 1, 1], [], []>} : vector<9x32xbf16>, vector<32x64xbf16>, vector<9x64xf32> -> vector<9x64xf32>
    %8 = arith.addf %1, %7 : vector<9x64xf32>
    %c0_6 = arith.constant 0 : index
    %c1 = arith.constant 1 : index
    %c0_7 = arith.constant 0 : index
    %9 = vector.load %arg2[%c0_6, %c1, %c0_7] : memref<1x10x32xf32, #tpu.memory_space<vmem>>, vector<1x9x32xf32>
    %10 = vector.shape_cast %9 : vector<1x9x32xf32> to vector<9x32xf32>
    %11 = arith.truncf %10 : vector<9x32xf32> to vector<9x32xbf16>
    %12 = vector.extract_strided_slice %0 {offsets = [1, 0, 0], sizes = [1, 32, 64], strides = [1, 1, 1]} : vector<2x32x64xbf16> to vector<1x32x64xbf16>
    %13 = vector.shape_cast %12 : vector<1x32x64xbf16> to vector<32x64xbf16>
    %cst_8 = arith.constant dense<0.000000e+00> : vector<9x64xf32>
    %14 = tpu.matmul %11, %13, %cst_8 {dimension_numbers = #tpu.dot_dimension_numbers<[1], [0], [0], [1], [0, 0, 1, 1], [], []>} : vector<9x32xbf16>, vector<32x64xbf16>, vector<9x64xf32> -> vector<9x64xf32>
    %15 = arith.addf %8, %14 : vector<9x64xf32>
    %c0_9 = arith.constant 0 : index
    %c0_10 = arith.constant 0 : index
    %16 = vector.load %arg4[%c0_9, %c0_10] : memref<1x64xf32, #tpu.memory_space<vmem>>, vector<1x64xf32>
    %17 = vector.broadcast %16 : vector<1x64xf32> to vector<9x64xf32>
    %18 = arith.addf %15, %17 : vector<9x64xf32>
    %cst_11 = arith.constant 0.000000e+00 : f32
    %19 = vector.broadcast %cst_11 : f32 to vector<9x64xf32>
    %20 = arith.maximumf %18, %19 : vector<9x64xf32>
    %cst_12 = arith.constant dense<0.000000e+00> : vector<64xf32>
    %21 = vector.multi_reduction <add>, %20, %cst_12 [0] : vector<9x64xf32> to vector<64xf32>
    %22 = vector.shape_cast %21 : vector<64xf32> to vector<1x64xf32>
    %cst_13 = arith.constant 9.000000e+00 : f32
    %23 = vector.broadcast %cst_13 : f32 to vector<1x64xf32>
    %24 = arith.divf %22, %23 : vector<1x64xf32>
    %25 = vector.broadcast %24 : vector<1x64xf32> to vector<9x64xf32>
    %26 = arith.subf %20, %25 : vector<9x64xf32>
    %27 = arith.mulf %26, %26 : vector<9x64xf32>
    %cst_14 = arith.constant dense<0.000000e+00> : vector<64xf32>
    %28 = vector.multi_reduction <add>, %27, %cst_14 [0] : vector<9x64xf32> to vector<64xf32>
    %29 = vector.shape_cast %28 : vector<64xf32> to vector<1x64xf32>
    %cst_15 = arith.constant 9.000000e+00 : f32
    %30 = vector.broadcast %cst_15 : f32 to vector<1x64xf32>
    %31 = arith.divf %29, %30 : vector<1x64xf32>
    %32 = vector.broadcast %24 : vector<1x64xf32> to vector<9x64xf32>
    %33 = arith.subf %20, %32 : vector<9x64xf32>
    %cst_16 = arith.constant 9.99999974E-6 : f32
    %34 = vector.broadcast %cst_16 : f32 to vector<1x64xf32>
    %35 = arith.addf %31, %34 : vector<1x64xf32>
    %36 = math.rsqrt %35 : vector<1x64xf32>
    %37 = vector.broadcast %36 : vector<1x64xf32> to vector<9x64xf32>
    %38 = arith.mulf %33, %37 : vector<9x64xf32>
    %c0_17 = arith.constant 0 : index
    %c0_18 = arith.constant 0 : index
    %39 = vector.load %arg5[%c0_17, %c0_18] : memref<8x9xf32, #tpu.memory_space<vmem>>, vector<8x9xf32>
    %cst_19 = arith.constant dense<0.000000e+00> : vector<8x64xf32>
    %40 = tpu.matmul %39, %38, %cst_19 {dimension_numbers = #tpu.dot_dimension_numbers<[1], [0], [0], [1], [0, 0, 1, 1], [], []>} : vector<8x9xf32>, vector<9x64xf32>, vector<8x64xf32> -> vector<8x64xf32>
    %c0_20 = arith.constant 0 : index
    %c0_21 = arith.constant 0 : index
    %c0_22 = arith.constant 0 : index
    %41 = vector.load %arg6[%c0_20, %c0_21, %c0_22] : memref<1x8x64xf32, #tpu.memory_space<vmem>>, vector<1x8x64xf32>
    %42 = vector.shape_cast %41 : vector<1x8x64xf32> to vector<8x64xf32>
    %43 = vector.shape_cast %40 : vector<8x64xf32> to vector<1x8x64xf32>
    tpu.vector_store %arg6[%c0_20, %c0_21, %c0_22], %43 {strides = array<i32>} : memref<1x8x64xf32, #tpu.memory_space<vmem>>, vector<1x8x64xf32>,
    return
  }
  func.func @transform_0(%arg0: i32, %arg1: i32) -> (i32, i32, i32) {
    %c0_i32 = arith.constant 0 : i32
    %c0_i32_0 = arith.constant 0 : i32
    %c0_i32_1 = arith.constant 0 : i32
    return %arg0, %c0_i32, %c0_i32_0 : i32, i32, i32
  }
  func.func @transform_1(%arg0: i32, %arg1: i32) -> (i32, i32, i32) {
    %c0_i32 = arith.constant 0 : i32
    %c0_i32_0 = arith.constant 0 : i32
    %c0_i32_1 = arith.constant 0 : i32
    return %c0_i32, %c0_i32_0, %arg1 : i32, i32, i32
  }
  func.func @transform_2(%arg0: i32, %arg1: i32) -> (i32, i32) {
    %c0_i32 = arith.constant 0 : i32
    %c0_i32_0 = arith.constant 0 : i32
    return %c0_i32, %arg1 : i32, i32
  }
  func.func @transform_3(%arg0: i32, %arg1: i32) -> (i32, i32) {
    %c0_i32 = arith.constant 0 : i32
    %c0_i32_0 = arith.constant 0 : i32
    %c0_i32_1 = arith.constant 0 : i32
    return %c0_i32, %c0_i32_0 : i32, i32
  }
  func.func @transform_4(%arg0: i32, %arg1: i32) -> (i32, i32, i32) {
    %c0_i32 = arith.constant 0 : i32
    %c0_i32_0 = arith.constant 0 : i32
    return %arg0, %c0_i32, %arg1 : i32, i32, i32
  }
}

</mosaic_0001>

<llo_original>
// kernel: conv1d_embed_forward.5
$region0: #{conv1d_embed_forward.5}
  #allocation0 [shape = 'u32[]', space=smem, size = 0x4, offset = 0x4, fixed_abs, tag = 'smem constant byte address 0x4 - core index']
  #allocation1 [shape = 'u32[144,128]{1,0:T(1,128)}', space=vmem, size = 0x12000, scoped, tag = 'internal scratch']
  %s0 = inlined_call_operand.vmem [shape: f32[2,15,32], index: 0, kind: input, shape index: {}]
  %s1 = inlined_call_operand.vmem [shape: bf16[2,32,32], index: 1, kind: input, shape index: {}]
  %s2 = inlined_call_operand.vmem [shape: f32[1,32], index: 2, kind: input, shape index: {}]
  %s3 = inlined_call_operand.vmem [shape: f32[2,13,32], index: 3, kind: output, shape index: {}]
  %s4 = sld [smem:[#allocation0]]
  $region45: #{conv1d_embed_forward.5} parent=0
    _
  %s6 = ssub.s32 1, %s4
  %s7 = scalar_select 0, %s6, %s4
  loop: start=0, step=1, limit=4
  $region2: #{conv1d_embed_forward.5} parent=0 // loop_pre_header
    _
  $region3: #{conv1d_embed_forward.5} parent=0 // loop_header
    %s9 = sphi 0, %s13
    %p10 = scmp.ge.s32.totalorder %s9, 4
    %s16 = sphi 0, %s28
    %s17 = sphi 0, %s24
    %s18 = sphi 0, %s16
    %s19 = sphi 0, %s17
    %s20 = sphi 0, %s18
    %s21 = sphi 0, %s19
    %s31 = sphi 0, %s33
    %s34 = sphi 0, %s31
    %s35 = sphi 0, %s34
    %s51 = sphi 0, %s35
    %s57 = sphi 0, %s59
    %s60 = sphi 0, %s57
    %s61 = sphi 0, %s60
    %s77 = sphi 0, %s61
    %s83 = sphi 0, %s85
    %s86 = sphi 0, %s83
    %s87 = sphi 0, %s86
    %s103 = sphi 0, %s87
    %s111 = sphi 0, %s113
    %s114 = sphi 0, %s111
    %s115 = sphi 0, %s114
    %s131 = sphi 0, %s115
  $region4: #{conv1d_embed_forward.5} parent=0 // loop_header_branch
    %12 = sbr.rel (%p10) target = $region8
  $region5: #{conv1d_embed_forward.5} parent=0 // loop_body
    %s14 = ssub.s32 %s9, 1
    %s15 = ssub.s32 %s9, 2
    %s22 = sadd.s32 1, %s17
    %p23 = scmp.ge.s32.totalorder %s22, 1
    %s24 = scalar_select %p23, 0, %s22
    %s25 = sadd.s32 1, %s16
    %s26 = scalar_select %p23, %s25, %s16
    %p27 = scmp.ge.s32.totalorder %s26, 2
    %s28 = scalar_select %p27, 0, %s26
    %s29 = ssub.s32 %s16, %s28
    %p30 = scmp.eq.s32.totalorder %s29, 0
    %s32 = sadd.s32 %s31, 1
    %s33 = scalar_select %p30, %s31, %s32
    %p36 = pneg %p30
    %p37 = scmp.eq.s32.totalorder %s9, 1
    %p38 = por %p36, %p37
    %p39 = scmp.ne.s32.totalorder %s31, %s34
    %p40 = scmp.eq.s32.totalorder %s9, 0
    %p41 = por %p39, %p40
    %p42 = scmp.ne.s32.totalorder %s31, %s34
    %p43 = scmp.eq.s32.totalorder %s14, 1
    %p44 = por %p42, %p43
    %p45 = scmp.ne.s32.totalorder %s34, %s35
    %p46 = scmp.eq.s32.totalorder %s14, 0
    %p47 = por %p45, %p46
    %p48 = scmp.ne.s32.totalorder %s34, %s35
    %p49 = scmp.eq.s32.totalorder %s15, 1
    %p50 = por %p48, %p49
    %p52 = scmp.ne.s32.totalorder %s35, %s51
    %p53 = scmp.eq.s32.totalorder %s15, 0
    %p54 = por %p52, %p53
    %s55 = ssub.s32 %s17, %s24
    %p56 = scmp.eq.s32.totalorder %s55, 0
    %s58 = sadd.s32 %s57, 1
    %s59 = scalar_select %p56, %s57, %s58
    %p62 = pneg %p56
    %p63 = scmp.eq.s32.totalorder %s9, 1
    %p64 = por %p62, %p63
    %p65 = scmp.ne.s32.totalorder %s57, %s60
    %p66 = scmp.eq.s32.totalorder %s9, 0
    %p67 = por %p65, %p66
    %p68 = scmp.ne.s32.totalorder %s57, %s60
    %p69 = scmp.eq.s32.totalorder %s14, 1
    %p70 = por %p68, %p69
    %p71 = scmp.ne.s32.totalorder %s60, %s61
    %p72 = scmp.eq.s32.totalorder %s14, 0
    %p73 = por %p71, %p72
    %p74 = scmp.ne.s32.totalorder %s60, %s61
    %p75 = scmp.eq.s32.totalorder %s15, 1
    %p76 = por %p74, %p75
    %p78 = scmp.ne.s32.totalorder %s61, %s77
    %p79 = scmp.eq.s32.totalorder %s15, 0
    %p80 = por %p78, %p79
    %s81 = ssub.s32 %s17, %s24
    %p82 = scmp.eq.s32.totalorder %s81, 0
    %s84 = sadd.s32 %s83, 1
    %s85 = scalar_select %p82, %s83, %s84
    %p88 = pneg %p82
    %p89 = scmp.eq.s32.totalorder %s9, 1
    %p90 = por %p88, %p89
    %p91 = scmp.ne.s32.totalorder %s83, %s86
    %p92 = scmp.eq.s32.totalorder %s9, 0
    %p93 = por %p91, %p92
    %p94 = scmp.ne.s32.totalorder %s83, %s86
    %p95 = scmp.eq.s32.totalorder %s14, 1
    %p96 = por %p94, %p95
    %p97 = scmp.ne.s32.totalorder %s86, %s87
    %p98 = scmp.eq.s32.totalorder %s14, 0
    %p99 = por %p97, %p98
    %p100 = scmp.ne.s32.totalorder %s86, %s87
    %p101 = scmp.eq.s32.totalorder %s15, 1
    %p102 = por %p100, %p101
    %p104 = scmp.ne.s32.totalorder %s87, %s103
    %p105 = scmp.eq.s32.totalorder %s15, 0
    %p106 = por %p104, %p105
    %s107 = ssub.s32 %s16, %s28
    %s108 = ssub.s32 %s17, %s24
    %s109 = sor.u32 %s107, %s108
    %p110 = scmp.eq.s32.totalorder %s109, 0
    %s112 = sadd.s32 %s111, 1
    %s113 = scalar_select %p110, %s111, %s112
    %p116 = pneg %p110
    %p117 = scmp.eq.s32.totalorder %s9, 1
    %p118 = por %p116, %p117
    %p119 = scmp.ne.s32.totalorder %s111, %s114
    %p120 = scmp.eq.s32.totalorder %s9, 0
    %p121 = por %p119, %p120
    %p122 = scmp.ne.s32.totalorder %s111, %s114
    %p123 = scmp.eq.s32.totalorder %s14, 1
    %p124 = por %p122, %p123
    %p125 = scmp.ne.s32.totalorder %s114, %s115
    %p126 = scmp.eq.s32.totalorder %s14, 0
    %p127 = por %p125, %p126
    %p128 = scmp.ne.s32.totalorder %s114, %s115
    %p129 = scmp.eq.s32.totalorder %s15, 1
    %p130 = por %p128, %p129
    %p132 = scmp.ne.s32.totalorder %s115, %s131
    %p133 = scmp.eq.s32.totalorder %s15, 0
    %p134 = por %p132, %p133
    %p135 = scmp.le.s32.totalorder 1, %s9
    %p136 = scmp.lt.s32.totalorder %s9, 3
    %p137 = pnand %p135, %p136
    %p138 = pneg %p137
    // Predicated region
    $region9: #{conv1d_embed_forward.5} parent=5 // pred_check
      _
    $region10: #{conv1d_embed_forward.5} parent=5 // pred_check_branch
      %140 = sbr.rel (%p137) target = $region12
    $region11: #{conv1d_embed_forward.5} parent=5 // pred_region
      %s141 = ssub.s32 %s9, 1
      // Predicated region
      $region13: #{conv1d_embed_forward.5} parent=11 // pred_check
        %p142 = pneg %p73
      $region14: #{conv1d_embed_forward.5} parent=11 // pred_check_branch
        %144 = sbr.rel (%p142) target = $region16
      $region15: #{conv1d_embed_forward.5} parent=11 // pred_region
        %p145 = scmp.lt.s32.totalorder %s19, 0
        %s146 = scalar_select %p145, %s19, 0
        %s147 = smul.addr %s146, 4
        %s148 = scalar_lea.vmem %s1, %s147
      $region16: #{conv1d_embed_forward.5} parent=11 // pred_fallthru
        _
      // Predicated region
      $region17: #{conv1d_embed_forward.5} parent=11 // pred_check
        %p149 = pneg %p99
      $region18: #{conv1d_embed_forward.5} parent=11 // pred_check_branch
        %151 = sbr.rel (%p149) target = $region20
      $region19: #{conv1d_embed_forward.5} parent=11 // pred_region
        %p152 = scmp.lt.s32.totalorder %s19, 0
        %s153 = scalar_select %p152, %s19, 0
        %s154 = scalar_lea.vmem %s2, %s153
      $region20: #{conv1d_embed_forward.5} parent=11 // pred_fallthru
        _
    $region12: #{conv1d_embed_forward.5} parent=5 // pred_fallthru
      _
    %p155 = scmp.lt.s32.totalorder %s9, 2
    // Predicated region
    $region21: #{conv1d_embed_forward.5} parent=5 // pred_check
      %p156 = pneg %p155
    $region22: #{conv1d_embed_forward.5} parent=5 // pred_check_branch
      %158 = sbr.rel (%p156) target = $region24
    $region23: #{conv1d_embed_forward.5} parent=5 // pred_region
      // Predicated region
      $region25: #{conv1d_embed_forward.5} parent=23 // pred_check
        %p159 = pneg %p41
      $region26: #{conv1d_embed_forward.5} parent=23 // pred_check_branch
        %161 = sbr.rel (%p159) target = $region28
      $region27: #{conv1d_embed_forward.5} parent=23 // pred_region
        %p162 = scmp.lt.s32.totalorder %s16, 1
        %s163 = scalar_select %p162, %s16, 1
        %s164 = smul.addr %s163, 2
        %s165 = smul.addr %s164, 8
        %s166 = scalar_lea.vmem %s0, %s165
      $region28: #{conv1d_embed_forward.5} parent=23 // pred_fallthru
        _
    $region24: #{conv1d_embed_forward.5} parent=5 // pred_fallthru
      _
    %p167 = scmp.le.s32.totalorder 1, %s9
    %p168 = scmp.lt.s32.totalorder %s9, 3
    %p169 = pnand %p167, %p168
    %p170 = pneg %p169
    // Predicated region
    $region29: #{conv1d_embed_forward.5} parent=5 // pred_check
      _
    $region30: #{conv1d_embed_forward.5} parent=5 // pred_check_branch
      %172 = sbr.rel (%p169) target = $region32
    $region31: #{conv1d_embed_forward.5} parent=5 // pred_region
      %s173 = ssub.s32 %s9, 1
      %p174 = scmp.lt.s32.totalorder %s18, 1
      %s175 = scalar_select %p174, %s18, 1
      %s176 = smul.addr %s175, 2
      %s177 = smul.addr %s176, 8
      %s178 = scalar_lea.vmem %s0, %s177
      %p179 = pneg %p47
      %p180 = pneg %p44
      %p181 = scmp.lt.s32.totalorder %s19, 0
      %s182 = scalar_select %p181, %s19, 0
      %s183 = smul.addr %s182, 4
      %s184 = scalar_lea.vmem %s1, %s183
      %p185 = pneg %p73
      %p186 = pneg %p70
      %p187 = scmp.lt.s32.totalorder %s19, 0
      %s188 = scalar_select %p187, %s19, 0
      %s189 = scalar_lea.vmem %s2, %s188
      %p190 = pneg %p99
      %p191 = pneg %p96
      %p192 = pneg %p127
      %p193 = pneg %p124
      %p194 = scmp.lt.s32.totalorder %s18, 1
      %s195 = scalar_select %p194, %s18, 1
      %p196 = scmp.lt.s32.totalorder %s19, 0
      %s197 = scalar_select %p196, %s19, 0
      %s198 = smul.addr %s195, 2
      %s199 = sadd.s32 %s197, %s198
      %s200 = smul.addr %s199, 8
      %s201 = scalar_lea.vmem %s3, %s200
      %p202 = scmp.lt.s32.totalorder %s18, 1
      %s203 = scalar_select %p202, %s18, 1
      %s204 = smul.addr %s203, 2
      %s205 = smul.addr %s204, 8
      %s206 = scalar_lea.vmem %s0, %s205
      %p207 = scmp.lt.s32.totalorder %s19, 0
      %s208 = scalar_select %p207, %s19, 0
      %s209 = smul.addr %s208, 4
      %s210 = scalar_lea.vmem %s1, %s209
      %p211 = scmp.lt.s32.totalorder %s19, 0
      %s212 = scalar_select %p211, %s19, 0
      %s213 = scalar_lea.vmem %s2, %s212
      %p214 = scmp.lt.s32.totalorder %s18, 1
      %s215 = scalar_select %p214, %s18, 1
      %p216 = scmp.lt.s32.totalorder %s19, 0
      %s217 = scalar_select %p216, %s19, 0
      %s218 = smul.addr %s215, 2
      %s219 = sadd.s32 %s217, %s218
      %s220 = smul.addr %s219, 8
      %s221 = scalar_lea.vmem %s3, %s220
      %v223 = vld [vmem:[%s210] sm:$0xf]
      %v224 = vld [vmem:[%s210 + $0x4] sm:$0xf]
      %v225 = vld [vmem:[%s210 + $0x8] sm:$0xf]
      %v226 = vld [vmem:[%s210 + $0xc] sm:$0xf]
      %v227 = vld [vmem:[%s210 + $0x10] sm:$0xf]
      %v228 = vld [vmem:[%s210 + $0x14] sm:$0xf]
      %v229 = vld [vmem:[%s210 + $0x18] sm:$0xf]
      %v230 = vld [vmem:[%s210 + $0x1c] sm:$0xf]
      %v231 = vld [vmem:[%s206] sm:$0xff]
      %v232 = vld [vmem:[%s206 + $0x8] sm:$0x1f]
      %v233 = vpack.c.bf16 %v232, %v231
      %v234 = vld [vmem:[%s206 + $0x1] sm:$0xff]
      %v235 = vld [vmem:[%s206 + $0x9] sm:$0x1f]
      %v236 = vpack.c.bf16 %v235, %v234
      %v241 = vunpack.c.l.b16 %v227
      %v242 = vunpack.c.l.b16 %v228
      %v243 = vunpack.c.l.b16 %v229
      %v244 = vunpack.c.l.b16 %v230
      %v245 = vpack.c.b16 %v242, %v241
      %v246 = vpack.c.b16 %v244, %v243
      %vm249 = vcmask 261120
      %v251 = vsel %vm249, %v236, 0
      %253 = vmatprep.subr.bf16.mxu0 0
      %254 = vmatpush1.bf16.msra.mxu0 %v245
      %255 = vmatprep.subr.bf16.mxu0 0
      %256 = vmatpush1.bf16.msra.mxu0 %v246
      %257 = vmatprep.subr.bf16.mxu0 0
      %258 = vmatpush1.bf16.msra.mxu0 0
      %259 = vmatprep.subr.bf16.mxu0 0
      %260 = vmatpush1.bf16.msra.mxu0 0
      %261 = vmatprep.subr.bf16.mxu0 0
      %262 = vmatpush1.bf16.msra.mxu0 0
      %263 = vmatprep.subr.bf16.mxu0 0
      %264 = vmatpush1.bf16.msra.mxu0 0
      %265 = vmatprep.subr.bf16.mxu0 0
      %266 = vmatpush1.bf16.msra.mxu0 0
      %267 = vmatprep.subr.bf16.mxu0 0
      %268 = vmatpush1.bf16.msra.mxu0 0
      %269 = vmatprep.subr.bf16.mxu0 0
      %270 = vmatpush1.bf16.msra.mxu0 0
      %271 = vmatprep.subr.bf16.mxu0 0
      %272 = vmatpush1.bf16.msra.mxu0 0
      %273 = vmatprep.subr.bf16.mxu0 0
      %274 = vmatpush1.bf16.msra.mxu0 0
      %275 = vmatprep.subr.bf16.mxu0 0
      %276 = vmatpush1.bf16.msra.mxu0 0
      %277 = vmatprep.subr.bf16.mxu0 0
      %278 = vmatpush1.bf16.msra.mxu0 0
      %279 = vmatprep.subr.bf16.mxu0 0
      %280 = vmatpush1.bf16.msra.mxu0 0
      %281 = vmatprep.subr.bf16.mxu0 0
      %282 = vmatpush1.bf16.msra.mxu0 0
      %283 = vmatprep.subr.bf16.mxu0 0
      %284 = vmatpush1.bf16.msra.mxu0 0
      %285 = vmatprep.mubr.bf16.mxu0 0
      %286 = vmatmul.mubr.bf16.gmra.mrb[0].mxu0 %v251
      %v287 = vpop.f32.mrb[0].mxu0
      %v288 = vadd.f32 0.0, %v287
      %v289 = vpop.f32.mrb[0].mxu0
      %v290 = vpop.f32.mrb[0].mxu0
      %v291 = vadd.f32 0.0, %v290
      %v292 = vpop.f32.mrb[0].mxu0
      %293 = vdwg.mxu0
      %v298 = vunpack.c.l.b16 %v223
      %v299 = vunpack.c.l.b16 %v224
      %v300 = vunpack.c.l.b16 %v225
      %v301 = vunpack.c.l.b16 %v226
      %v302 = vpack.c.b16 %v299, %v298
      %v303 = vpack.c.b16 %v301, %v300
      %v307 = vsel %vm249, %v233, 0
      %309 = vmatprep.subr.bf16.mxu0 0
      %310 = vmatpush1.bf16.msra.mxu0 %v302
      %311 = vmatprep.subr.bf16.mxu0 0
      %312 = vmatpush1.bf16.msra.mxu0 %v303
      %313 = vmatprep.subr.bf16.mxu0 0
      %314 = vmatpush1.bf16.msra.mxu0 0
      %315 = vmatprep.subr.bf16.mxu0 0
      %316 = vmatpush1.bf16.msra.mxu0 0
      %317 = vmatprep.subr.bf16.mxu0 0
      %318 = vmatpush1.bf16.msra.mxu0 0
      %319 = vmatprep.subr.bf16.mxu0 0
      %320 = vmatpush1.bf16.msra.mxu0 0
      %321 = vmatprep.subr.bf16.mxu0 0
      %322 = vmatpush1.bf16.msra.mxu0 0
      %323 = vmatprep.subr.bf16.mxu0 0
      %324 = vmatpush1.bf16.msra.mxu0 0
      %325 = vmatprep.subr.bf16.mxu0 0
      %326 = vmatpush1.bf16.msra.mxu0 0
      %327 = vmatprep.subr.bf16.mxu0 0
      %328 = vmatpush1.bf16.msra.mxu0 0
      %329 = vmatprep.subr.bf16.mxu0 0
      %330 = vmatpush1.bf16.msra.mxu0 0
      %331 = vmatprep.subr.bf16.mxu0 0
      %332 = vmatpush1.bf16.msra.mxu0 0
      %333 = vmatprep.subr.bf16.mxu0 0
      %334 = vmatpush1.bf16.msra.mxu0 0
      %335 = vmatprep.subr.bf16.mxu0 0
      %336 = vmatpush1.bf16.msra.mxu0 0
      %337 = vmatprep.subr.bf16.mxu0 0
      %338 = vmatpush1.bf16.msra.mxu0 0
      %339 = vmatprep.subr.bf16.mxu0 0
      %340 = vmatpush1.bf16.msra.mxu0 0
      %341 = vmatprep.mubr.bf16.mxu0 0
      %342 = vmatmul.mubr.bf16.gmra.mrb[0].mxu0 %v307
      %v343 = vpop.f32.mrb[0].mxu0
      %v344 = vadd.f32 %v288, %v343
      %v345 = vpop.f32.mrb[0].mxu0
      %v346 = vpop.f32.mrb[0].mxu0
      %v347 = vadd.f32 %v291, %v346
      %v348 = vpop.f32.mrb[0].mxu0
      %349 = vdwg.mxu0
      %v350 = vld [vmem:[%s213] sm:$0x1]
      %v352 = vlaneseq
      %v353 = vshrl.u32 %v352, 7
      %v354 = vsub.s32 0, %v353
      %v355 = vrot.slane %v350, %v354
      %v357 = vadd.f32 %v344, %v355
      %v358 = vadd.f32 %v347, %v355
      %v359 = vmax.f32 %v357, 0.0
      %v360 = vmax.f32 %v358, 0.0
      %v361 = vsel %vm249, %v359, 0.0
      %vm362 = vcmask 258048
      %v363 = vsel %vm362, %v360, 0.0
      %v364 = vadd.f32 %v361, %v363
      %v365 = vrot.slane %v364, 4
      %v366 = vadd.f32 %v364, %v365
      %v367 = vrot.slane %v366, 2
      %v368 = vadd.f32 %v366, %v367
      %v369 = vrot.slane %v368, 1
      %v370 = vadd.f32 %v368, %v369
      %v371 = vrcp.pop 13.0
      %v372 = vmul.f32 %v370, %v371
      %v373 = vsub.f32 %v359, %v372
      %v374 = vsub.f32 %v360, %v372
      %v375 = vmul.f32 %v373, %v373
      %v376 = vmul.f32 %v374, %v374
      %v377 = vsel %vm249, %v375, 0.0
      %v378 = vsel %vm362, %v376, 0.0
      %v379 = vadd.f32 %v377, %v378
      %v380 = vrot.slane %v379, 4
      %v381 = vadd.f32 %v379, %v380
      %v382 = vrot.slane %v381, 2
      %v383 = vadd.f32 %v381, %v382
      %v384 = vrot.slane %v383, 1
      %v385 = vadd.f32 %v383, %v384
      %v386 = vmul.f32 %v385, %v371
      %v387 = vadd.f32 %v386, 1e-05
      %v388 = vrsqrt.pop %v387
      %v389 = vmul.f32 %v373, %v388
      %v390 = vmul.f32 %v374, %v388
      %391 = vst.msk [vmem:[%s221] sm:$0xff] %vm249, %v389
      %392 = vst.msk [vmem:[%s221 + $0x8] sm:$0x1f] %vm362, %v390
      %p393 = scmp.lt.s32.totalorder %s18, 1
      %s394 = scalar_select %p393, %s18, 1
      %p395 = scmp.lt.s32.totalorder %s19, 0
      %s396 = scalar_select %p395, %s19, 0
      %s397 = smul.addr %s394, 2
      %s398 = sadd.s32 %s396, %s397
      %s399 = smul.addr %s398, 8
      %s400 = scalar_lea.vmem %s3, %s399
      // Predicated region
      $region33: #{conv1d_embed_forward.5} parent=31 // pred_check
        %p401 = pneg %p124
      $region34: #{conv1d_embed_forward.5} parent=31 // pred_check_branch
        %403 = sbr.rel (%p401) target = $region36
      $region35: #{conv1d_embed_forward.5} parent=31 // pred_region
        _
      $region36: #{conv1d_embed_forward.5} parent=31 // pred_fallthru
        _
    $region32: #{conv1d_embed_forward.5} parent=5 // pred_fallthru
      _
    %p404 = scmp.le.s32.totalorder 2, %s9
    // Predicated region
    $region37: #{conv1d_embed_forward.5} parent=5 // pred_check
      %p405 = pneg %p404
    $region38: #{conv1d_embed_forward.5} parent=5 // pred_check_branch
      %407 = sbr.rel (%p405) target = $region40
    $region39: #{conv1d_embed_forward.5} parent=5 // pred_region
      %s408 = ssub.s32 %s9, 2
      // Predicated region
      $region41: #{conv1d_embed_forward.5} parent=39 // pred_check
        %p409 = pneg %p130
      $region42: #{conv1d_embed_forward.5} parent=39 // pred_check_branch
        %411 = sbr.rel (%p409) target = $region44
      $region43: #{conv1d_embed_forward.5} parent=39 // pred_region
        %p412 = scmp.lt.s32.totalorder %s20, 1
        %s413 = scalar_select %p412, %s20, 1
        %p414 = scmp.lt.s32.totalorder %s21, 0
        %s415 = scalar_select %p414, %s21, 0
        %s416 = smul.addr %s413, 2
        %s417 = sadd.s32 %s415, %s416
        %s418 = smul.addr %s417, 8
        %s419 = scalar_lea.vmem %s3, %s418
      $region44: #{conv1d_embed_forward.5} parent=39 // pred_fallthru
        _
    $region40: #{conv1d_embed_forward.5} parent=5 // pred_fallthru
      _
  $region6: #{conv1d_embed_forward.5} parent=0 // loop_footer
    %s13 = sadd.s32 1, %s9
  $region7: #{conv1d_embed_forward.5} parent=0 // loop_footer_branch
    %8 = sbr.rel target = $region3
  $region8: #{conv1d_embed_forward.5} parent=0 // loop_exit
    _

// kernel: conv1d_embed_forward.4
$region0: #{conv1d_embed_forward.4}
  #allocation0 [shape = 'u32[]', space=smem, size = 0x4, offset = 0x4, fixed_abs, tag = 'smem constant byte address 0x4 - core index']
  #allocation1 [shape = 'u32[144,128]{1,0:T(1,128)}', space=vmem, size = 0x12000, scoped, tag = 'internal scratch']
  %s0 = inlined_call_operand.vmem [shape: f32[2,32,8], index: 0, kind: input, shape index: {}]
  %s1 = inlined_call_operand.vmem [shape: bf16[4,8,16], index: 1, kind: input, shape index: {}]
  %s2 = inlined_call_operand.vmem [shape: f32[1,16], index: 2, kind: input, shape index: {}]
  %s3 = inlined_call_operand.vmem [shape: f32[2,29,16], index: 3, kind: output, shape index: {}]
  %s4 = sld [smem:[#allocation0]]
  $region45: #{conv1d_embed_forward.4} parent=0
    _
  %s6 = ssub.s32 1, %s4
  %s7 = scalar_select 0, %s6, %s4
  loop: start=0, step=1, limit=4
  $region2: #{conv1d_embed_forward.4} parent=0 // loop_pre_header
    _
  $region3: #{conv1d_embed_forward.4} parent=0 // loop_header
    %s9 = sphi 0, %s13
    %p10 = scmp.ge.s32.totalorder %s9, 4
    %s16 = sphi 0, %s28
    %s17 = sphi 0, %s24
    %s18 = sphi 0, %s16
    %s19 = sphi 0, %s17
    %s20 = sphi 0, %s18
    %s21 = sphi 0, %s19
    %s31 = sphi 0, %s33
    %s34 = sphi 0, %s31
    %s35 = sphi 0, %s34
    %s51 = sphi 0, %s35
    %s57 = sphi 0, %s59
    %s60 = sphi 0, %s57
    %s61 = sphi 0, %s60
    %s77 = sphi 0, %s61
    %s83 = sphi 0, %s85
    %s86 = sphi 0, %s83
    %s87 = sphi 0, %s86
    %s103 = sphi 0, %s87
    %s111 = sphi 0, %s113
    %s114 = sphi 0, %s111
    %s115 = sphi 0, %s114
    %s131 = sphi 0, %s115
  $region4: #{conv1d_embed_forward.4} parent=0 // loop_header_branch
    %12 = sbr.rel (%p10) target = $region8
  $region5: #{conv1d_embed_forward.4} parent=0 // loop_body
    %s14 = ssub.s32 %s9, 1
    %s15 = ssub.s32 %s9, 2
    %s22 = sadd.s32 1, %s17
    %p23 = scmp.ge.s32.totalorder %s22, 1
    %s24 = scalar_select %p23, 0, %s22
    %s25 = sadd.s32 1, %s16
    %s26 = scalar_select %p23, %s25, %s16
    %p27 = scmp.ge.s32.totalorder %s26, 2
    %s28 = scalar_select %p27, 0, %s26
    %s29 = ssub.s32 %s16, %s28
    %p30 = scmp.eq.s32.totalorder %s29, 0
    %s32 = sadd.s32 %s31, 1
    %s33 = scalar_select %p30, %s31, %s32
    %p36 = pneg %p30
    %p37 = scmp.eq.s32.totalorder %s9, 1
    %p38 = por %p36, %p37
    %p39 = scmp.ne.s32.totalorder %s31, %s34
    %p40 = scmp.eq.s32.totalorder %s9, 0
    %p41 = por %p39, %p40
    %p42 = scmp.ne.s32.totalorder %s31, %s34
    %p43 = scmp.eq.s32.totalorder %s14, 1
    %p44 = por %p42, %p43
    %p45 = scmp.ne.s32.totalorder %s34, %s35
    %p46 = scmp.eq.s32.totalorder %s14, 0
    %p47 = por %p45, %p46
    %p48 = scmp.ne.s32.totalorder %s34, %s35
    %p49 = scmp.eq.s32.totalorder %s15, 1
    %p50 = por %p48, %p49
    %p52 = scmp.ne.s32.totalorder %s35, %s51
    %p53 = scmp.eq.s32.totalorder %s15, 0
    %p54 = por %p52, %p53
    %s55 = ssub.s32 %s17, %s24
    %p56 = scmp.eq.s32.totalorder %s55, 0
    %s58 = sadd.s32 %s57, 1
    %s59 = scalar_select %p56, %s57, %s58
    %p62 = pneg %p56
    %p63 = scmp.eq.s32.totalorder %s9, 1
    %p64 = por %p62, %p63
    %p65 = scmp.ne.s32.totalorder %s57, %s60
    %p66 = scmp.eq.s32.totalorder %s9, 0
    %p67 = por %p65, %p66
    %p68 = scmp.ne.s32.totalorder %s57, %s60
    %p69 = scmp.eq.s32.totalorder %s14, 1
    %p70 = por %p68, %p69
    %p71 = scmp.ne.s32.totalorder %s60, %s61
    %p72 = scmp.eq.s32.totalorder %s14, 0
    %p73 = por %p71, %p72
    %p74 = scmp.ne.s32.totalorder %s60, %s61
    %p75 = scmp.eq.s32.totalorder %s15, 1
    %p76 = por %p74, %p75
    %p78 = scmp.ne.s32.totalorder %s61, %s77
    %p79 = scmp.eq.s32.totalorder %s15, 0
    %p80 = por %p78, %p79
    %s81 = ssub.s32 %s17, %s24
    %p82 = scmp.eq.s32.totalorder %s81, 0
    %s84 = sadd.s32 %s83, 1
    %s85 = scalar_select %p82, %s83, %s84
    %p88 = pneg %p82
    %p89 = scmp.eq.s32.totalorder %s9, 1
    %p90 = por %p88, %p89
    %p91 = scmp.ne.s32.totalorder %s83, %s86
    %p92 = scmp.eq.s32.totalorder %s9, 0
    %p93 = por %p91, %p92
    %p94 = scmp.ne.s32.totalorder %s83, %s86
    %p95 = scmp.eq.s32.totalorder %s14, 1
    %p96 = por %p94, %p95
    %p97 = scmp.ne.s32.totalorder %s86, %s87
    %p98 = scmp.eq.s32.totalorder %s14, 0
    %p99 = por %p97, %p98
    %p100 = scmp.ne.s32.totalorder %s86, %s87
    %p101 = scmp.eq.s32.totalorder %s15, 1
    %p102 = por %p100, %p101
    %p104 = scmp.ne.s32.totalorder %s87, %s103
    %p105 = scmp.eq.s32.totalorder %s15, 0
    %p106 = por %p104, %p105
    %s107 = ssub.s32 %s16, %s28
    %s108 = ssub.s32 %s17, %s24
    %s109 = sor.u32 %s107, %s108
    %p110 = scmp.eq.s32.totalorder %s109, 0
    %s112 = sadd.s32 %s111, 1
    %s113 = scalar_select %p110, %s111, %s112
    %p116 = pneg %p110
    %p117 = scmp.eq.s32.totalorder %s9, 1
    %p118 = por %p116, %p117
    %p119 = scmp.ne.s32.totalorder %s111, %s114
    %p120 = scmp.eq.s32.totalorder %s9, 0
    %p121 = por %p119, %p120
    %p122 = scmp.ne.s32.totalorder %s111, %s114
    %p123 = scmp.eq.s32.totalorder %s14, 1
    %p124 = por %p122, %p123
    %p125 = scmp.ne.s32.totalorder %s114, %s115
    %p126 = scmp.eq.s32.totalorder %s14, 0
    %p127 = por %p125, %p126
    %p128 = scmp.ne.s32.totalorder %s114, %s115
    %p129 = scmp.eq.s32.totalorder %s15, 1
    %p130 = por %p128, %p129
    %p132 = scmp.ne.s32.totalorder %s115, %s131
    %p133 = scmp.eq.s32.totalorder %s15, 0
    %p134 = por %p132, %p133
    %p135 = scmp.le.s32.totalorder 1, %s9
    %p136 = scmp.lt.s32.totalorder %s9, 3
    %p137 = pnand %p135, %p136
    %p138 = pneg %p137
    // Predicated region
    $region9: #{conv1d_embed_forward.4} parent=5 // pred_check
      _
    $region10: #{conv1d_embed_forward.4} parent=5 // pred_check_branch
      %140 = sbr.rel (%p137) target = $region12
    $region11: #{conv1d_embed_forward.4} parent=5 // pred_region
      %s141 = ssub.s32 %s9, 1
      // Predicated region
      $region13: #{conv1d_embed_forward.4} parent=11 // pred_check
        %p142 = pneg %p73
      $region14: #{conv1d_embed_forward.4} parent=11 // pred_check_branch
        %144 = sbr.rel (%p142) target = $region16
      $region15: #{conv1d_embed_forward.4} parent=11 // pred_region
        %p145 = scmp.lt.s32.totalorder %s19, 0
        %s146 = scalar_select %p145, %s19, 0
        %s147 = smul.addr %s146, 4
        %s148 = scalar_lea.vmem %s1, %s147
      $region16: #{conv1d_embed_forward.4} parent=11 // pred_fallthru
        _
      // Predicated region
      $region17: #{conv1d_embed_forward.4} parent=11 // pred_check
        %p149 = pneg %p99
      $region18: #{conv1d_embed_forward.4} parent=11 // pred_check_branch
        %151 = sbr.rel (%p149) target = $region20
      $region19: #{conv1d_embed_forward.4} parent=11 // pred_region
        %p152 = scmp.lt.s32.totalorder %s19, 0
        %s153 = scalar_select %p152, %s19, 0
        %s154 = scalar_lea.vmem %s2, %s153
      $region20: #{conv1d_embed_forward.4} parent=11 // pred_fallthru
        _
    $region12: #{conv1d_embed_forward.4} parent=5 // pred_fallthru
      _
    %p155 = scmp.lt.s32.totalorder %s9, 2
    // Predicated region
    $region21: #{conv1d_embed_forward.4} parent=5 // pred_check
      %p156 = pneg %p155
    $region22: #{conv1d_embed_forward.4} parent=5 // pred_check_branch
      %158 = sbr.rel (%p156) target = $region24
    $region23: #{conv1d_embed_forward.4} parent=5 // pred_region
      // Predicated region
      $region25: #{conv1d_embed_forward.4} parent=23 // pred_check
        %p159 = pneg %p41
      $region26: #{conv1d_embed_forward.4} parent=23 // pred_check_branch
        %161 = sbr.rel (%p159) target = $region28
      $region27: #{conv1d_embed_forward.4} parent=23 // pred_region
        %p162 = scmp.lt.s32.totalorder %s16, 1
        %s163 = scalar_select %p162, %s16, 1
        %s164 = smul.addr %s163, 4
        %s165 = smul.addr %s164, 8
        %s166 = scalar_lea.vmem %s0, %s165
      $region28: #{conv1d_embed_forward.4} parent=23 // pred_fallthru
        _
    $region24: #{conv1d_embed_forward.4} parent=5 // pred_fallthru
      _
    %p167 = scmp.le.s32.totalorder 1, %s9
    %p168 = scmp.lt.s32.totalorder %s9, 3
    %p169 = pnand %p167, %p168
    %p170 = pneg %p169
    // Predicated region
    $region29: #{conv1d_embed_forward.4} parent=5 // pred_check
      _
    $region30: #{conv1d_embed_forward.4} parent=5 // pred_check_branch
      %172 = sbr.rel (%p169) target = $region32
    $region31: #{conv1d_embed_forward.4} parent=5 // pred_region
      %s173 = ssub.s32 %s9, 1
      %p174 = scmp.lt.s32.totalorder %s18, 1
      %s175 = scalar_select %p174, %s18, 1
      %s176 = smul.addr %s175, 4
      %s177 = smul.addr %s176, 8
      %s178 = scalar_lea.vmem %s0, %s177
      %p179 = pneg %p47
      %p180 = pneg %p44
      %p181 = scmp.lt.s32.totalorder %s19, 0
      %s182 = scalar_select %p181, %s19, 0
      %s183 = smul.addr %s182, 4
      %s184 = scalar_lea.vmem %s1, %s183
      %p185 = pneg %p73
      %p186 = pneg %p70
      %p187 = scmp.lt.s32.totalorder %s19, 0
      %s188 = scalar_select %p187, %s19, 0
      %s189 = scalar_lea.vmem %s2, %s188
      %p190 = pneg %p99
      %p191 = pneg %p96
      %p192 = pneg %p127
      %p193 = pneg %p124
      %p194 = scmp.lt.s32.totalorder %s18, 1
      %s195 = scalar_select %p194, %s18, 1
      %p196 = scmp.lt.s32.totalorder %s19, 0
      %s197 = scalar_select %p196, %s19, 0
      %s198 = smul.addr %s195, 4
      %s199 = sadd.s32 %s197, %s198
      %s200 = smul.addr %s199, 8
      %s201 = scalar_lea.vmem %s3, %s200
      %p202 = scmp.lt.s32.totalorder %s18, 1
      %s203 = scalar_select %p202, %s18, 1
      %s204 = smul.addr %s203, 4
      %s205 = smul.addr %s204, 8
      %s206 = scalar_lea.vmem %s0, %s205
      %p207 = scmp.lt.s32.totalorder %s19, 0
      %s208 = scalar_select %p207, %s19, 0
      %s209 = smul.addr %s208, 4
      %s210 = scalar_lea.vmem %s1, %s209
      %p211 = scmp.lt.s32.totalorder %s19, 0
      %s212 = scalar_select %p211, %s19, 0
      %s213 = scalar_lea.vmem %s2, %s212
      %p214 = scmp.lt.s32.totalorder %s18, 1
      %s215 = scalar_select %p214, %s18, 1
      %p216 = scmp.lt.s32.totalorder %s19, 0
      %s217 = scalar_select %p216, %s19, 0
      %s218 = smul.addr %s215, 4
      %s219 = sadd.s32 %s217, %s218
      %s220 = smul.addr %s219, 8
      %s221 = scalar_lea.vmem %s3, %s220
      %v223 = vld [vmem:[%s210] sm:$0xf]
      %v224 = vld [vmem:[%s210 + $0x4] sm:$0xf]
      %v225 = vld [vmem:[%s210 + $0x8] sm:$0xf]
      %v226 = vld [vmem:[%s210 + $0xc] sm:$0xf]
      %v227 = vld [vmem:[%s206] sm:$0xff]
      %v228 = vld [vmem:[%s206 + $0x8] sm:$0xff]
      %v229 = vld [vmem:[%s206 + $0x10] sm:$0xff]
      %v230 = vld [vmem:[%s206 + $0x18] sm:$0xff]
      %vm231 = vcmask 64512
      %v232 = vsel %vm231, %v227, 0.0
      %v233 = vsel %vm231, %v228, 0.0
      %v234 = vadd.f32 %v232, %v233
      %v235 = vsel %vm231, %v229, 0.0
      %v236 = vadd.f32 %v234, %v235
      %v237 = vsel %vm231, %v230, 0.0
      %v238 = vadd.f32 %v236, %v237
      %v239 = vrot.slane %v238, 4
      %v240 = vadd.f32 %v238, %v239
      %v241 = vrot.slane %v240, 2
      %v242 = vadd.f32 %v240, %v241
      %v243 = vrot.slane %v242, 1
      %v244 = vadd.f32 %v242, %v243
      %v245 = vmul.f32 %v227, %v227
      %v246 = vmul.f32 %v228, %v228
      %v247 = vmul.f32 %v229, %v229
      %v248 = vmul.f32 %v230, %v230
      %v249 = vsel %vm231, %v245, 0.0
      %v250 = vsel %vm231, %v246, 0.0
      %v251 = vadd.f32 %v249, %v250
      %v252 = vsel %vm231, %v247, 0.0
      %v253 = vadd.f32 %v251, %v252
      %v254 = vsel %vm231, %v248, 0.0
      %v255 = vadd.f32 %v253, %v254
      %v256 = vrot.slane %v255, 4
      %v257 = vadd.f32 %v255, %v256
      %v258 = vrot.slane %v257, 2
      %v259 = vadd.f32 %v257, %v258
      %v260 = vrot.slane %v259, 1
      %v261 = vadd.f32 %v259, %v260
      %263 = vrot.lane.b32.xlu0 %v244, 124
      %v264 = vpop.permute.xlu0 %263
      %v266 = vadd.f32 %v244, %v264
      %268 = vrot.lane.b32.xlu0 %v261, 124
      %v269 = vpop.permute.xlu0 %268
      %v271 = vadd.f32 %v261, %v269
      %v272 = vrcp.pop 64.0
      %v273 = vmul.f32 %v266, %v272
      %v274 = vmul.f32 %v271, %v272
      %v275 = vmul.f32 %v273, %v273
      %v276 = vsub.f32 %v274, %v275
      %v277 = vmax.f32 %v276, 0.0
      %v278 = vadd.f32 %v277, 1e-05
      %v279 = vrsqrt.pop %v278
      %281 = vrot.lane.b32.xlu0 %v273, 4
      %v282 = vpop.permute.xlu0 %281
      %vm284 = vcmask 31744
      %v285 = vsel %vm284, %v273, %v282
      %287 = vrot.lane.b32.xlu0 %v279, 4
      %v288 = vpop.permute.xlu0 %287
      %v290 = vsel %vm284, %v279, %v288
      %v291 = vld [vmem:[%s206 + $0x18] sm:$0x1f]
      %v292 = vlaneseq
      %v293 = vshrl.u32 %v292, 7
      %v294 = vsub.s32 0, %v293
      %v295 = vrot.slane %v285, %v294
      %v296 = vsub.f32 %v227, %v295
      %v297 = vsub.f32 %v228, %v295
      %v298 = vsub.f32 %v229, %v295
      %v299 = vsub.f32 %v291, %v295
      %v300 = vlaneseq
      %v301 = vshrl.u32 %v300, 7
      %v302 = vsub.s32 0, %v301
      %v303 = vrot.slane %v290, %v302
      %v304 = vmul.f32 %v296, %v303
      %v305 = vmul.f32 %v297, %v303
      %v306 = vmul.f32 %v298, %v303
      %v307 = vmul.f32 %v299, %v303
      %v308 = vpack.c.bf16 %v305, %v304
      %v309 = vpack.c.bf16 %v307, %v306
      %v310 = vld [vmem:[%s206 + $0x1] sm:$0xff]
      %v311 = vld [vmem:[%s206 + $0x9] sm:$0xff]
      %v312 = vld [vmem:[%s206 + $0x11] sm:$0xff]
      %v313 = vld [vmem:[%s206 + $0x19] sm:$0x1f]
      %v314 = vsub.f32 %v310, %v295
      %v315 = vsub.f32 %v311, %v295
      %v316 = vsub.f32 %v312, %v295
      %v317 = vsub.f32 %v313, %v295
      %v318 = vmul.f32 %v314, %v303
      %v319 = vmul.f32 %v315, %v303
      %v320 = vmul.f32 %v316, %v303
      %v321 = vmul.f32 %v317, %v303
      %v322 = vpack.c.bf16 %v319, %v318
      %v323 = vpack.c.bf16 %v321, %v320
      %v325 = vsel %vm231, %v322, 0
      %v328 = vsel %vm231, %v323, 0
      %vm330 = vcmask 1043456
      %v332 = vsel %vm330, %v224, 0
      %334 = vmatprep.subr.bf16.mxu0 0
      %335 = vmatpush1.bf16.msra.mxu0 %v332
      %336 = vmatprep.subr.bf16.mxu0 0
      %337 = vmatpush1.bf16.msra.mxu0 0
      %338 = vmatprep.subr.bf16.mxu0 0
      %339 = vmatpush1.bf16.msra.mxu0 0
      %340 = vmatprep.subr.bf16.mxu0 0
      %341 = vmatpush1.bf16.msra.mxu0 0
      %342 = vmatprep.subr.bf16.mxu0 0
      %343 = vmatpush1.bf16.msra.mxu0 0
      %344 = vmatprep.subr.bf16.mxu0 0
      %345 = vmatpush1.bf16.msra.mxu0 0
      %346 = vmatprep.subr.bf16.mxu0 0
      %347 = vmatpush1.bf16.msra.mxu0 0
      %348 = vmatprep.subr.bf16.mxu0 0
      %349 = vmatpush1.bf16.msra.mxu0 0
      %350 = vmatprep.subr.bf16.mxu0 0
      %351 = vmatpush1.bf16.msra.mxu0 0
      %352 = vmatprep.subr.bf16.mxu0 0
      %353 = vmatpush1.bf16.msra.mxu0 0
      %354 = vmatprep.subr.bf16.mxu0 0
      %355 = vmatpush1.bf16.msra.mxu0 0
      %356 = vmatprep.subr.bf16.mxu0 0
      %357 = vmatpush1.bf16.msra.mxu0 0
      %358 = vmatprep.subr.bf16.mxu0 0
      %359 = vmatpush1.bf16.msra.mxu0 0
      %360 = vmatprep.subr.bf16.mxu0 0
      %361 = vmatpush1.bf16.msra.mxu0 0
      %362 = vmatprep.subr.bf16.mxu0 0
      %363 = vmatpush1.bf16.msra.mxu0 0
      %364 = vmatprep.subr.bf16.mxu0 0
      %365 = vmatpush1.bf16.msra.mxu0 0
      %366 = vmatprep.mubr.bf16.mxu0 0
      %367 = vmatmul.mubr.bf16.gmra.mrb[0].mxu0 %v325
      %v368 = vpop.f32.mrb[0].mxu0
      %v369 = vadd.f32 0.0, %v368
      %v370 = vpop.f32.mrb[0].mxu0
      %v371 = vpop.f32.mrb[0].mxu0
      %v372 = vadd.f32 0.0, %v371
      %v373 = vpop.f32.mrb[0].mxu0
      %374 = vmatprep.mubr.bf16.mxu0 0
      %375 = vmatmul.mubr.bf16.gmra.mrb[0].mxu0 %v328
      %v376 = vpop.f32.mrb[0].mxu0
      %v377 = vadd.f32 0.0, %v376
      %v378 = vpop.f32.mrb[0].mxu0
      %v379 = vpop.f32.mrb[0].mxu0
      %v380 = vadd.f32 0.0, %v379
      %v381 = vpop.f32.mrb[0].mxu0
      %382 = vdwg.mxu0
      %v384 = vsel %vm231, %v308, 0
      %v387 = vsel %vm231, %v309, 0
      %v390 = vsel %vm330, %v223, 0
      %392 = vmatprep.subr.bf16.mxu0 0
      %393 = vmatpush1.bf16.msra.mxu0 %v390
      %394 = vmatprep.subr.bf16.mxu0 0
      %395 = vmatpush1.bf16.msra.mxu0 0
      %396 = vmatprep.subr.bf16.mxu0 0
      %397 = vmatpush1.bf16.msra.mxu0 0
      %398 = vmatprep.subr.bf16.mxu0 0
      %399 = vmatpush1.bf16.msra.mxu0 0
      %400 = vmatprep.subr.bf16.mxu0 0
      %401 = vmatpush1.bf16.msra.mxu0 0
      %402 = vmatprep.subr.bf16.mxu0 0
      %403 = vmatpush1.bf16.msra.mxu0 0
      %404 = vmatprep.subr.bf16.mxu0 0
      %405 = vmatpush1.bf16.msra.mxu0 0
      %406 = vmatprep.subr.bf16.mxu0 0
      %407 = vmatpush1.bf16.msra.mxu0 0
      %408 = vmatprep.subr.bf16.mxu0 0
      %409 = vmatpush1.bf16.msra.mxu0 0
      %410 = vmatprep.subr.bf16.mxu0 0
      %411 = vmatpush1.bf16.msra.mxu0 0
      %412 = vmatprep.subr.bf16.mxu0 0
      %413 = vmatpush1.bf16.msra.mxu0 0
      %414 = vmatprep.subr.bf16.mxu0 0
      %415 = vmatpush1.bf16.msra.mxu0 0
      %416 = vmatprep.subr.bf16.mxu0 0
      %417 = vmatpush1.bf16.msra.mxu0 0
      %418 = vmatprep.subr.bf16.mxu0 0
      %419 = vmatpush1.bf16.msra.mxu0 0
      %420 = vmatprep.subr.bf16.mxu0 0
      %421 = vmatpush1.bf16.msra.mxu0 0
      %422 = vmatprep.subr.bf16.mxu0 0
      %423 = vmatpush1.bf16.msra.mxu0 0
      %424 = vmatprep.mubr.bf16.mxu0 0
      %425 = vmatmul.mubr.bf16.gmra.mrb[0].mxu0 %v384
      %v426 = vpop.f32.mrb[0].mxu0
      %v427 = vadd.f32 %v369, %v426
      %v428 = vpop.f32.mrb[0].mxu0
      %v429 = vpop.f32.mrb[0].mxu0
      %v430 = vadd.f32 %v372, %v429
      %v431 = vpop.f32.mrb[0].mxu0
      %432 = vmatprep.mubr.bf16.mxu0 0
      %433 = vmatmul.mubr.bf16.gmra.mrb[0].mxu0 %v387
      %v434 = vpop.f32.mrb[0].mxu0
      %v435 = vadd.f32 %v377, %v434
      %v436 = vpop.f32.mrb[0].mxu0
      %v437 = vpop.f32.mrb[0].mxu0
      %v438 = vadd.f32 %v380, %v437
      %v439 = vpop.f32.mrb[0].mxu0
      %440 = vdwg.mxu0
      %v441 = vld [vmem:[%s206 + $0x2] sm:$0xff]
      %v442 = vld [vmem:[%s206 + $0xa] sm:$0xff]
      %v443 = vld [vmem:[%s206 + $0x12] sm:$0xff]
      %v444 = vld [vmem:[%s206 + $0x1a] sm:$0x1f]
      %v445 = vsub.f32 %v441, %v295
      %v446 = vsub.f32 %v442, %v295
      %v447 = vsub.f32 %v443, %v295
      %v448 = vsub.f32 %v444, %v295
      %v449 = vmul.f32 %v445, %v303
      %v450 = vmul.f32 %v446, %v303
      %v451 = vmul.f32 %v447, %v303
      %v452 = vmul.f32 %v448, %v303
      %v453 = vpack.c.bf16 %v450, %v449
      %v454 = vpack.c.bf16 %v452, %v451
      %v456 = vsel %vm231, %v453, 0
      %v459 = vsel %vm231, %v454, 0
      %v462 = vsel %vm330, %v225, 0
      %464 = vmatprep.subr.bf16.mxu0 0
      %465 = vmatpush1.bf16.msra.mxu0 %v462
      %466 = vmatprep.subr.bf16.mxu0 0
      %467 = vmatpush1.bf16.msra.mxu0 0
      %468 = vmatprep.subr.bf16.mxu0 0
      %469 = vmatpush1.bf16.msra.mxu0 0
      %470 = vmatprep.subr.bf16.mxu0 0
      %471 = vmatpush1.bf16.msra.mxu0 0
      %472 = vmatprep.subr.bf16.mxu0 0
      %473 = vmatpush1.bf16.msra.mxu0 0
      %474 = vmatprep.subr.bf16.mxu0 0
      %475 = vmatpush1.bf16.msra.mxu0 0
      %476 = vmatprep.subr.bf16.mxu0 0
      %477 = vmatpush1.bf16.msra.mxu0 0
      %478 = vmatprep.subr.bf16.mxu0 0
      %479 = vmatpush1.bf16.msra.mxu0 0
      %480 = vmatprep.subr.bf16.mxu0 0
      %481 = vmatpush1.bf16.msra.mxu0 0
      %482 = vmatprep.subr.bf16.mxu0 0
      %483 = vmatpush1.bf16.msra.mxu0 0
      %484 = vmatprep.subr.bf16.mxu0 0
      %485 = vmatpush1.bf16.msra.mxu0 0
      %486 = vmatprep.subr.bf16.mxu0 0
      %487 = vmatpush1.bf16.msra.mxu0 0
      %488 = vmatprep.subr.bf16.mxu0 0
      %489 = vmatpush1.bf16.msra.mxu0 0
      %490 = vmatprep.subr.bf16.mxu0 0
      %491 = vmatpush1.bf16.msra.mxu0 0
      %492 = vmatprep.subr.bf16.mxu0 0
      %493 = vmatpush1.bf16.msra.mxu0 0
      %494 = vmatprep.subr.bf16.mxu0 0
      %495 = vmatpush1.bf16.msra.mxu0 0
      %496 = vmatprep.mubr.bf16.mxu0 0
      %497 = vmatmul.mubr.bf16.gmra.mrb[0].mxu0 %v456
      %v498 = vpop.f32.mrb[0].mxu0
      %v499 = vadd.f32 0.0, %v498
      %v500 = vpop.f32.mrb[0].mxu0
      %v501 = vpop.f32.mrb[0].mxu0
      %v502 = vadd.f32 0.0, %v501
      %v503 = vpop.f32.mrb[0].mxu0
      %504 = vmatprep.mubr.bf16.mxu0 0
      %505 = vmatmul.mubr.bf16.gmra.mrb[0].mxu0 %v459
      %v506 = vpop.f32.mrb[0].mxu0
      %v507 = vadd.f32 0.0, %v506
      %v508 = vpop.f32.mrb[0].mxu0
      %v509 = vpop.f32.mrb[0].mxu0
      %v510 = vadd.f32 0.0, %v509
      %v511 = vpop.f32.mrb[0].mxu0
      %512 = vdwg.mxu0
      %v513 = vadd.f32 %v427, %v499
      %v514 = vadd.f32 %v430, %v502
      %v515 = vadd.f32 %v435, %v507
      %v516 = vadd.f32 %v438, %v510
      %v517 = vld [vmem:[%s206 + $0x3] sm:$0xff]
      %v518 = vld [vmem:[%s206 + $0xb] sm:$0xff]
      %v519 = vld [vmem:[%s206 + $0x13] sm:$0xff]
      %v520 = vld [vmem:[%s206 + $0x1b] sm:$0x1f]
      %v521 = vsub.f32 %v517, %v295
      %v522 = vsub.f32 %v518, %v295
      %v523 = vsub.f32 %v519, %v295
      %v524 = vsub.f32 %v520, %v295
      %v525 = vmul.f32 %v521, %v303
      %v526 = vmul.f32 %v522, %v303
      %v527 = vmul.f32 %v523, %v303
      %v528 = vmul.f32 %v524, %v303
      %v529 = vpack.c.bf16 %v526, %v525
      %v530 = vpack.c.bf16 %v528, %v527
      %v532 = vsel %vm231, %v529, 0
      %v535 = vsel %vm231, %v530, 0
      %v538 = vsel %vm330, %v226, 0
      %540 = vmatprep.subr.bf16.mxu0 0
      %541 = vmatpush1.bf16.msra.mxu0 %v538
      %542 = vmatprep.subr.bf16.mxu0 0
      %543 = vmatpush1.bf16.msra.mxu0 0
      %544 = vmatprep.subr.bf16.mxu0 0
      %545 = vmatpush1.bf16.msra.mxu0 0
      %546 = vmatprep.subr.bf16.mxu0 0
      %547 = vmatpush1.bf16.msra.mxu0 0
      %548 = vmatprep.subr.bf16.mxu0 0
      %549 = vmatpush1.bf16.msra.mxu0 0
      %550 = vmatprep.subr.bf16.mxu0 0
      %551 = vmatpush1.bf16.msra.mxu0 0
      %552 = vmatprep.subr.bf16.mxu0 0
      %553 = vmatpush1.bf16.msra.mxu0 0
      %554 = vmatprep.subr.bf16.mxu0 0
      %555 = vmatpush1.bf16.msra.mxu0 0
      %556 = vmatprep.subr.bf16.mxu0 0
      %557 = vmatpush1.bf16.msra.mxu0 0
      %558 = vmatprep.subr.bf16.mxu0 0
      %559 = vmatpush1.bf16.msra.mxu0 0
      %560 = vmatprep.subr.bf16.mxu0 0
      %561 = vmatpush1.bf16.msra.mxu0 0
      %562 = vmatprep.subr.bf16.mxu0 0
      %563 = vmatpush1.bf16.msra.mxu0 0
      %564 = vmatprep.subr.bf16.mxu0 0
      %565 = vmatpush1.bf16.msra.mxu0 0
      %566 = vmatprep.subr.bf16.mxu0 0
      %567 = vmatpush1.bf16.msra.mxu0 0
      %568 = vmatprep.subr.bf16.mxu0 0
      %569 = vmatpush1.bf16.msra.mxu0 0
      %570 = vmatprep.subr.bf16.mxu0 0
      %571 = vmatpush1.bf16.msra.mxu0 0
      %572 = vmatprep.mubr.bf16.mxu0 0
      %573 = vmatmul.mubr.bf16.gmra.mrb[0].mxu0 %v532
      %v574 = vpop.f32.mrb[0].mxu0
      %v575 = vadd.f32 0.0, %v574
      %v576 = vpop.f32.mrb[0].mxu0
      %v577 = vpop.f32.mrb[0].mxu0
      %v578 = vadd.f32 0.0, %v577
      %v579 = vpop.f32.mrb[0].mxu0
      %580 = vmatprep.mubr.bf16.mxu0 0
      %581 = vmatmul.mubr.bf16.gmra.mrb[0].mxu0 %v535
      %v582 = vpop.f32.mrb[0].mxu0
      %v583 = vadd.f32 0.0, %v582
      %v584 = vpop.f32.mrb[0].mxu0
      %v585 = vpop.f32.mrb[0].mxu0
      %v586 = vadd.f32 0.0, %v585
      %v587 = vpop.f32.mrb[0].mxu0
      %588 = vdwg.mxu0
      %v589 = vadd.f32 %v513, %v575
      %v590 = vadd.f32 %v514, %v578
      %v591 = vadd.f32 %v515, %v583
      %v592 = vadd.f32 %v516, %v586
      %v593 = vld [vmem:[%s213] sm:$0x1]
      %v595 = vlaneseq
      %v596 = vshrl.u32 %v595, 7
      %v597 = vsub.s32 0, %v596
      %v598 = vrot.slane %v593, %v597
      %v600 = vadd.f32 %v589, %v598
      %v601 = vadd.f32 %v590, %v598
      %v602 = vadd.f32 %v591, %v598
      %v603 = vadd.f32 %v592, %v598
      %v604 = vmax.f32 %v600, 0.0
      %v605 = vmax.f32 %v601, 0.0
      %v606 = vmax.f32 %v602, 0.0
      %v607 = vmax.f32 %v603, 0.0
      %vm608 = vcmask 130048
      %v609 = vsel %vm608, %v604, 0.0
      %v610 = vsel %vm608, %v605, 0.0
      %v611 = vadd.f32 %v609, %v610
      %v612 = vsel %vm608, %v606, 0.0
      %v613 = vadd.f32 %v611, %v612
      %vm614 = vcmask 126976
      %v615 = vsel %vm614, %v607, 0.0
      %v616 = vadd.f32 %v613, %v615
      %v617 = vrot.slane %v616, 4
      %v618 = vadd.f32 %v616, %v617
      %v619 = vrot.slane %v618, 2
      %v620 = vadd.f32 %v618, %v619
      %v621 = vrot.slane %v620, 1
      %v622 = vadd.f32 %v620, %v621
      %v623 = vrcp.pop 29.0
      %v624 = vmul.f32 %v622, %v623
      %v625 = vsub.f32 %v604, %v624
      %v626 = vsub.f32 %v605, %v624
      %v627 = vsub.f32 %v606, %v624
      %v628 = vsub.f32 %v607, %v624
      %v629 = vmul.f32 %v625, %v625
      %v630 = vmul.f32 %v626, %v626
      %v631 = vmul.f32 %v627, %v627
      %v632 = vmul.f32 %v628, %v628
      %v633 = vsel %vm608, %v629, 0.0
      %v634 = vsel %vm608, %v630, 0.0
      %v635 = vadd.f32 %v633, %v634
      %v636 = vsel %vm608, %v631, 0.0
      %v637 = vadd.f32 %v635, %v636
      %v638 = vsel %vm614, %v632, 0.0
      %v639 = vadd.f32 %v637, %v638
      %v640 = vrot.slane %v639, 4
      %v641 = vadd.f32 %v639, %v640
      %v642 = vrot.slane %v641, 2
      %v643 = vadd.f32 %v641, %v642
      %v644 = vrot.slane %v643, 1
      %v645 = vadd.f32 %v643, %v644
      %v646 = vmul.f32 %v645, %v623
      %v647 = vadd.f32 %v646, 1e-05
      %v648 = vrsqrt.pop %v647
      %v649 = vmul.f32 %v625, %v648
      %v650 = vmul.f32 %v626, %v648
      %v651 = vmul.f32 %v627, %v648
      %v652 = vmul.f32 %v628, %v648
      %653 = vst.msk [vmem:[%s221] sm:$0xff] %vm608, %v649
      %654 = vst.msk [vmem:[%s221 + $0x8] sm:$0xff] %vm608, %v650
      %655 = vst.msk [vmem:[%s221 + $0x10] sm:$0xff] %vm608, %v651
      %656 = vst.msk [vmem:[%s221 + $0x18] sm:$0x1f] %vm614, %v652
      %p657 = scmp.lt.s32.totalorder %s18, 1
      %s658 = scalar_select %p657, %s18, 1
      %p659 = scmp.lt.s32.totalorder %s19, 0
      %s660 = scalar_select %p659, %s19, 0
      %s661 = smul.addr %s658, 4
      %s662 = sadd.s32 %s660, %s661
      %s663 = smul.addr %s662, 8
      %s664 = scalar_lea.vmem %s3, %s663
      // Predicated region
      $region33: #{conv1d_embed_forward.4} parent=31 // pred_check
        %p665 = pneg %p124
      $region34: #{conv1d_embed_forward.4} parent=31 // pred_check_branch
        %667 = sbr.rel (%p665) target = $region36
      $region35: #{conv1d_embed_forward.4} parent=31 // pred_region
        _
      $region36: #{conv1d_embed_forward.4} parent=31 // pred_fallthru
        _
    $region32: #{conv1d_embed_forward.4} parent=5 // pred_fallthru
      _
    %p668 = scmp.le.s32.totalorder 2, %s9
    // Predicated region
    $region37: #{conv1d_embed_forward.4} parent=5 // pred_check
      %p669 = pneg %p668
    $region38: #{conv1d_embed_forward.4} parent=5 // pred_check_branch
      %671 = sbr.rel (%p669) target = $region40
    $region39: #{conv1d_embed_forward.4} parent=5 // pred_region
      %s672 = ssub.s32 %s9, 2
      // Predicated region
      $region41: #{conv1d_embed_forward.4} parent=39 // pred_check
        %p673 = pneg %p130
      $region42: #{conv1d_embed_forward.4} parent=39 // pred_check_branch
        %675 = sbr.rel (%p673) target = $region44
      $region43: #{conv1d_embed_forward.4} parent=39 // pred_region
        %p676 = scmp.lt.s32.totalorder %s20, 1
        %s677 = scalar_select %p676, %s20, 1
        %p678 = scmp.lt.s32.totalorder %s21, 0
        %s679 = scalar_select %p678, %s21, 0
        %s680 = smul.addr %s677, 4
        %s681 = sadd.s32 %s679, %s680
        %s682 = smul.addr %s681, 8
        %s683 = scalar_lea.vmem %s3, %s682
      $region44: #{conv1d_embed_forward.4} parent=39 // pred_fallthru
        _
    $region40: #{conv1d_embed_forward.4} parent=5 // pred_fallthru
      _
  $region6: #{conv1d_embed_forward.4} parent=0 // loop_footer
    %s13 = sadd.s32 1, %s9
  $region7: #{conv1d_embed_forward.4} parent=0 // loop_footer_branch
    %8 = sbr.rel target = $region3
  $region8: #{conv1d_embed_forward.4} parent=0 // loop_exit
    _

// kernel: conv1d_embed_forward.6
$region0: #{conv1d_embed_forward.6}
  #allocation0 [shape = 'u32[]', space=smem, size = 0x4, offset = 0x4, fixed_abs, tag = 'smem constant byte address 0x4 - core index']
  #allocation1 [shape = 'u32[144,128]{1,0:T(1,128)}', space=vmem, size = 0x12000, scoped, tag = 'internal scratch']
  %s0 = inlined_call_operand.vmem [shape: f32[2,13,32], index: 0, kind: input, shape index: {}]
  %s1 = inlined_call_operand.vmem [shape: bf16[4,32,32], index: 1, kind: input, shape index: {}]
  %s2 = inlined_call_operand.vmem [shape: f32[1,32], index: 2, kind: input, shape index: {}]
  %s3 = inlined_call_operand.vmem [shape: f32[2,10,32], index: 3, kind: output, shape index: {}]
  %s4 = sld [smem:[#allocation0]]
  $region45: #{conv1d_embed_forward.6} parent=0
    _
  %s6 = ssub.s32 1, %s4
  %s7 = scalar_select 0, %s6, %s4
  loop: start=0, step=1, limit=4
  $region2: #{conv1d_embed_forward.6} parent=0 // loop_pre_header
    _
  $region3: #{conv1d_embed_forward.6} parent=0 // loop_header
    %s9 = sphi 0, %s13
    %p10 = scmp.ge.s32.totalorder %s9, 4
    %s16 = sphi 0, %s28
    %s17 = sphi 0, %s24
    %s18 = sphi 0, %s16
    %s19 = sphi 0, %s17
    %s20 = sphi 0, %s18
    %s21 = sphi 0, %s19
    %s31 = sphi 0, %s33
    %s34 = sphi 0, %s31
    %s35 = sphi 0, %s34
    %s51 = sphi 0, %s35
    %s57 = sphi 0, %s59
    %s60 = sphi 0, %s57
    %s61 = sphi 0, %s60
    %s77 = sphi 0, %s61
    %s83 = sphi 0, %s85
    %s86 = sphi 0, %s83
    %s87 = sphi 0, %s86
    %s103 = sphi 0, %s87
    %s111 = sphi 0, %s113
    %s114 = sphi 0, %s111
    %s115 = sphi 0, %s114
    %s131 = sphi 0, %s115
  $region4: #{conv1d_embed_forward.6} parent=0 // loop_header_branch
    %12 = sbr.rel (%p10) target = $region8
  $region5: #{conv1d_embed_forward.6} parent=0 // loop_body
    %s14 = ssub.s32 %s9, 1
    %s15 = ssub.s32 %s9, 2
    %s22 = sadd.s32 1, %s17
    %p23 = scmp.ge.s32.totalorder %s22, 1
    %s24 = scalar_select %p23, 0, %s22
    %s25 = sadd.s32 1, %s16
    %s26 = scalar_select %p23, %s25, %s16
    %p27 = scmp.ge.s32.totalorder %s26, 2
    %s28 = scalar_select %p27, 0, %s26
    %s29 = ssub.s32 %s16, %s28
    %p30 = scmp.eq.s32.totalorder %s29, 0
    %s32 = sadd.s32 %s31, 1
    %s33 = scalar_select %p30, %s31, %s32
    %p36 = pneg %p30
    %p37 = scmp.eq.s32.totalorder %s9, 1
    %p38 = por %p36, %p37
    %p39 = scmp.ne.s32.totalorder %s31, %s34
    %p40 = scmp.eq.s32.totalorder %s9, 0
    %p41 = por %p39, %p40
    %p42 = scmp.ne.s32.totalorder %s31, %s34
    %p43 = scmp.eq.s32.totalorder %s14, 1
    %p44 = por %p42, %p43
    %p45 = scmp.ne.s32.totalorder %s34, %s35
    %p46 = scmp.eq.s32.totalorder %s14, 0
    %p47 = por %p45, %p46
    %p48 = scmp.ne.s32.totalorder %s34, %s35
    %p49 = scmp.eq.s32.totalorder %s15, 1
    %p50 = por %p48, %p49
    %p52 = scmp.ne.s32.totalorder %s35, %s51
    %p53 = scmp.eq.s32.totalorder %s15, 0
    %p54 = por %p52, %p53
    %s55 = ssub.s32 %s17, %s24
    %p56 = scmp.eq.s32.totalorder %s55, 0
    %s58 = sadd.s32 %s57, 1
    %s59 = scalar_select %p56, %s57, %s58
    %p62 = pneg %p56
    %p63 = scmp.eq.s32.totalorder %s9, 1
    %p64 = por %p62, %p63
    %p65 = scmp.ne.s32.totalorder %s57, %s60
    %p66 = scmp.eq.s32.totalorder %s9, 0
    %p67 = por %p65, %p66
    %p68 = scmp.ne.s32.totalorder %s57, %s60
    %p69 = scmp.eq.s32.totalorder %s14, 1
    %p70 = por %p68, %p69
    %p71 = scmp.ne.s32.totalorder %s60, %s61
    %p72 = scmp.eq.s32.totalorder %s14, 0
    %p73 = por %p71, %p72
    %p74 = scmp.ne.s32.totalorder %s60, %s61
    %p75 = scmp.eq.s32.totalorder %s15, 1
    %p76 = por %p74, %p75
    %p78 = scmp.ne.s32.totalorder %s61, %s77
    %p79 = scmp.eq.s32.totalorder %s15, 0
    %p80 = por %p78, %p79
    %s81 = ssub.s32 %s17, %s24
    %p82 = scmp.eq.s32.totalorder %s81, 0
    %s84 = sadd.s32 %s83, 1
    %s85 = scalar_select %p82, %s83, %s84
    %p88 = pneg %p82
    %p89 = scmp.eq.s32.totalorder %s9, 1
    %p90 = por %p88, %p89
    %p91 = scmp.ne.s32.totalorder %s83, %s86
    %p92 = scmp.eq.s32.totalorder %s9, 0
    %p93 = por %p91, %p92
    %p94 = scmp.ne.s32.totalorder %s83, %s86
    %p95 = scmp.eq.s32.totalorder %s14, 1
    %p96 = por %p94, %p95
    %p97 = scmp.ne.s32.totalorder %s86, %s87
    %p98 = scmp.eq.s32.totalorder %s14, 0
    %p99 = por %p97, %p98
    %p100 = scmp.ne.s32.totalorder %s86, %s87
    %p101 = scmp.eq.s32.totalorder %s15, 1
    %p102 = por %p100, %p101
    %p104 = scmp.ne.s32.totalorder %s87, %s103
    %p105 = scmp.eq.s32.totalorder %s15, 0
    %p106 = por %p104, %p105
    %s107 = ssub.s32 %s16, %s28
    %s108 = ssub.s32 %s17, %s24
    %s109 = sor.u32 %s107, %s108
    %p110 = scmp.eq.s32.totalorder %s109, 0
    %s112 = sadd.s32 %s111, 1
    %s113 = scalar_select %p110, %s111, %s112
    %p116 = pneg %p110
    %p117 = scmp.eq.s32.totalorder %s9, 1
    %p118 = por %p116, %p117
    %p119 = scmp.ne.s32.totalorder %s111, %s114
    %p120 = scmp.eq.s32.totalorder %s9, 0
    %p121 = por %p119, %p120
    %p122 = scmp.ne.s32.totalorder %s111, %s114
    %p123 = scmp.eq.s32.totalorder %s14, 1
    %p124 = por %p122, %p123
    %p125 = scmp.ne.s32.totalorder %s114, %s115
    %p126 = scmp.eq.s32.totalorder %s14, 0
    %p127 = por %p125, %p126
    %p128 = scmp.ne.s32.totalorder %s114, %s115
    %p129 = scmp.eq.s32.totalorder %s15, 1
    %p130 = por %p128, %p129
    %p132 = scmp.ne.s32.totalorder %s115, %s131
    %p133 = scmp.eq.s32.totalorder %s15, 0
    %p134 = por %p132, %p133
    %p135 = scmp.le.s32.totalorder 1, %s9
    %p136 = scmp.lt.s32.totalorder %s9, 3
    %p137 = pnand %p135, %p136
    %p138 = pneg %p137
    // Predicated region
    $region9: #{conv1d_embed_forward.6} parent=5 // pred_check
      _
    $region10: #{conv1d_embed_forward.6} parent=5 // pred_check_branch
      %140 = sbr.rel (%p137) target = $region12
    $region11: #{conv1d_embed_forward.6} parent=5 // pred_region
      %s141 = ssub.s32 %s9, 1
      // Predicated region
      $region13: #{conv1d_embed_forward.6} parent=11 // pred_check
        %p142 = pneg %p73
      $region14: #{conv1d_embed_forward.6} parent=11 // pred_check_branch
        %144 = sbr.rel (%p142) target = $region16
      $region15: #{conv1d_embed_forward.6} parent=11 // pred_region
        %p145 = scmp.lt.s32.totalorder %s19, 0
        %s146 = scalar_select %p145, %s19, 0
        %s147 = smul.addr %s146, 4
        %s148 = scalar_lea.vmem %s1, %s147
      $region16: #{conv1d_embed_forward.6} parent=11 // pred_fallthru
        _
      // Predicated region
      $region17: #{conv1d_embed_forward.6} parent=11 // pred_check
        %p149 = pneg %p99
      $region18: #{conv1d_embed_forward.6} parent=11 // pred_check_branch
        %151 = sbr.rel (%p149) target = $region20
      $region19: #{conv1d_embed_forward.6} parent=11 // pred_region
        %p152 = scmp.lt.s32.totalorder %s19, 0
        %s153 = scalar_select %p152, %s19, 0
        %s154 = scalar_lea.vmem %s2, %s153
      $region20: #{conv1d_embed_forward.6} parent=11 // pred_fallthru
        _
    $region12: #{conv1d_embed_forward.6} parent=5 // pred_fallthru
      _
    %p155 = scmp.lt.s32.totalorder %s9, 2
    // Predicated region
    $region21: #{conv1d_embed_forward.6} parent=5 // pred_check
      %p156 = pneg %p155
    $region22: #{conv1d_embed_forward.6} parent=5 // pred_check_branch
      %158 = sbr.rel (%p156) target = $region24
    $region23: #{conv1d_embed_forward.6} parent=5 // pred_region
      // Predicated region
      $region25: #{conv1d_embed_forward.6} parent=23 // pred_check
        %p159 = pneg %p41
      $region26: #{conv1d_embed_forward.6} parent=23 // pred_check_branch
        %161 = sbr.rel (%p159) target = $region28
      $region27: #{conv1d_embed_forward.6} parent=23 // pred_region
        %p162 = scmp.lt.s32.totalorder %s16, 1
        %s163 = scalar_select %p162, %s16, 1
        %s164 = smul.addr %s163, 2
        %s165 = smul.addr %s164, 8
        %s166 = scalar_lea.vmem %s0, %s165
      $region28: #{conv1d_embed_forward.6} parent=23 // pred_fallthru
        _
    $region24: #{conv1d_embed_forward.6} parent=5 // pred_fallthru
      _
    %p167 = scmp.le.s32.totalorder 1, %s9
    %p168 = scmp.lt.s32.totalorder %s9, 3
    %p169 = pnand %p167, %p168
    %p170 = pneg %p169
    // Predicated region
    $region29: #{conv1d_embed_forward.6} parent=5 // pred_check
      _
    $region30: #{conv1d_embed_forward.6} parent=5 // pred_check_branch
      %172 = sbr.rel (%p169) target = $region32
    $region31: #{conv1d_embed_forward.6} parent=5 // pred_region
      %s173 = ssub.s32 %s9, 1
      %p174 = scmp.lt.s32.totalorder %s18, 1
      %s175 = scalar_select %p174, %s18, 1
      %s176 = smul.addr %s175, 2
      %s177 = smul.addr %s176, 8
      %s178 = scalar_lea.vmem %s0, %s177
      %p179 = pneg %p47
      %p180 = pneg %p44
      %p181 = scmp.lt.s32.totalorder %s19, 0
      %s182 = scalar_select %p181, %s19, 0
      %s183 = smul.addr %s182, 4
      %s184 = scalar_lea.vmem %s1, %s183
      %p185 = pneg %p73
      %p186 = pneg %p70
      %p187 = scmp.lt.s32.totalorder %s19, 0
      %s188 = scalar_select %p187, %s19, 0
      %s189 = scalar_lea.vmem %s2, %s188
      %p190 = pneg %p99
      %p191 = pneg %p96
      %p192 = pneg %p127
      %p193 = pneg %p124
      %p194 = scmp.lt.s32.totalorder %s18, 1
      %s195 = scalar_select %p194, %s18, 1
      %p196 = scmp.lt.s32.totalorder %s19, 0
      %s197 = scalar_select %p196, %s19, 0
      %s198 = smul.addr %s195, 2
      %s199 = sadd.s32 %s197, %s198
      %s200 = smul.addr %s199, 8
      %s201 = scalar_lea.vmem %s3, %s200
      %p202 = scmp.lt.s32.totalorder %s18, 1
      %s203 = scalar_select %p202, %s18, 1
      %s204 = smul.addr %s203, 2
      %s205 = smul.addr %s204, 8
      %s206 = scalar_lea.vmem %s0, %s205
      %p207 = scmp.lt.s32.totalorder %s19, 0
      %s208 = scalar_select %p207, %s19, 0
      %s209 = smul.addr %s208, 4
      %s210 = scalar_lea.vmem %s1, %s209
      %p211 = scmp.lt.s32.totalorder %s19, 0
      %s212 = scalar_select %p211, %s19, 0
      %s213 = scalar_lea.vmem %s2, %s212
      %p214 = scmp.lt.s32.totalorder %s18, 1
      %s215 = scalar_select %p214, %s18, 1
      %p216 = scmp.lt.s32.totalorder %s19, 0
      %s217 = scalar_select %p216, %s19, 0
      %s218 = smul.addr %s215, 2
      %s219 = sadd.s32 %s217, %s218
      %s220 = smul.addr %s219, 8
      %s221 = scalar_lea.vmem %s3, %s220
      %v223 = vld [vmem:[%s210] sm:$0xf]
      %v224 = vld [vmem:[%s210 + $0x4] sm:$0xf]
      %v225 = vld [vmem:[%s210 + $0x8] sm:$0xf]
      %v226 = vld [vmem:[%s210 + $0xc] sm:$0xf]
      %v227 = vld [vmem:[%s210 + $0x10] sm:$0xf]
      %v228 = vld [vmem:[%s210 + $0x14] sm:$0xf]
      %v229 = vld [vmem:[%s210 + $0x18] sm:$0xf]
      %v230 = vld [vmem:[%s210 + $0x1c] sm:$0xf]
      %v231 = vld [vmem:[%s210 + $0x20] sm:$0xf]
      %v232 = vld [vmem:[%s210 + $0x24] sm:$0xf]
      %v233 = vld [vmem:[%s210 + $0x28] sm:$0xf]
      %v234 = vld [vmem:[%s210 + $0x2c] sm:$0xf]
      %v235 = vld [vmem:[%s210 + $0x30] sm:$0xf]
      %v236 = vld [vmem:[%s210 + $0x34] sm:$0xf]
      %v237 = vld [vmem:[%s210 + $0x38] sm:$0xf]
      %v238 = vld [vmem:[%s210 + $0x3c] sm:$0xf]
      %v239 = vld [vmem:[%s206] sm:$0xff]
      %v240 = vld [vmem:[%s206 + $0x8] sm:$0x3]
      %v241 = vpack.c.bf16 %v240, %v239
      %v242 = vld [vmem:[%s206 + $0x1] sm:$0xff]
      %v243 = vld [vmem:[%s206 + $0x9] sm:$0x3]
      %v244 = vpack.c.bf16 %v243, %v242
      %v249 = vunpack.c.l.b16 %v227
      %v250 = vunpack.c.l.b16 %v228
      %v251 = vunpack.c.l.b16 %v229
      %v252 = vunpack.c.l.b16 %v230
      %v253 = vpack.c.b16 %v250, %v249
      %v254 = vpack.c.b16 %v252, %v251
      %vm257 = vcmask 261120
      %v259 = vsel %vm257, %v244, 0
      %261 = vmatprep.subr.bf16.mxu0 0
      %262 = vmatpush1.bf16.msra.mxu0 %v253
      %263 = vmatprep.subr.bf16.mxu0 0
      %264 = vmatpush1.bf16.msra.mxu0 %v254
      %265 = vmatprep.subr.bf16.mxu0 0
      %266 = vmatpush1.bf16.msra.mxu0 0
      %267 = vmatprep.subr.bf16.mxu0 0
      %268 = vmatpush1.bf16.msra.mxu0 0
      %269 = vmatprep.subr.bf16.mxu0 0
      %270 = vmatpush1.bf16.msra.mxu0 0
      %271 = vmatprep.subr.bf16.mxu0 0
      %272 = vmatpush1.bf16.msra.mxu0 0
      %273 = vmatprep.subr.bf16.mxu0 0
      %274 = vmatpush1.bf16.msra.mxu0 0
      %275 = vmatprep.subr.bf16.mxu0 0
      %276 = vmatpush1.bf16.msra.mxu0 0
      %277 = vmatprep.subr.bf16.mxu0 0
      %278 = vmatpush1.bf16.msra.mxu0 0
      %279 = vmatprep.subr.bf16.mxu0 0
      %280 = vmatpush1.bf16.msra.mxu0 0
      %281 = vmatprep.subr.bf16.mxu0 0
      %282 = vmatpush1.bf16.msra.mxu0 0
      %283 = vmatprep.subr.bf16.mxu0 0
      %284 = vmatpush1.bf16.msra.mxu0 0
      %285 = vmatprep.subr.bf16.mxu0 0
      %286 = vmatpush1.bf16.msra.mxu0 0
      %287 = vmatprep.subr.bf16.mxu0 0
      %288 = vmatpush1.bf16.msra.mxu0 0
      %289 = vmatprep.subr.bf16.mxu0 0
      %290 = vmatpush1.bf16.msra.mxu0 0
      %291 = vmatprep.subr.bf16.mxu0 0
      %292 = vmatpush1.bf16.msra.mxu0 0
      %293 = vmatprep.mubr.bf16.mxu0 0
      %294 = vmatmul.mubr.bf16.gmra.mrb[0].mxu0 %v259
      %v295 = vpop.f32.mrb[0].mxu0
      %v296 = vadd.f32 0.0, %v295
      %v297 = vpop.f32.mrb[0].mxu0
      %v298 = vpop.f32.mrb[0].mxu0
      %v299 = vadd.f32 0.0, %v298
      %v300 = vpop.f32.mrb[0].mxu0
      %301 = vdwg.mxu0
      %v306 = vunpack.c.l.b16 %v223
      %v307 = vunpack.c.l.b16 %v224
      %v308 = vunpack.c.l.b16 %v225
      %v309 = vunpack.c.l.b16 %v226
      %v310 = vpack.c.b16 %v307, %v306
      %v311 = vpack.c.b16 %v309, %v308
      %v315 = vsel %vm257, %v241, 0
      %317 = vmatprep.subr.bf16.mxu0 0
      %318 = vmatpush1.bf16.msra.mxu0 %v310
      %319 = vmatprep.subr.bf16.mxu0 0
      %320 = vmatpush1.bf16.msra.mxu0 %v311
      %321 = vmatprep.subr.bf16.mxu0 0
      %322 = vmatpush1.bf16.msra.mxu0 0
      %323 = vmatprep.subr.bf16.mxu0 0
      %324 = vmatpush1.bf16.msra.mxu0 0
      %325 = vmatprep.subr.bf16.mxu0 0
      %326 = vmatpush1.bf16.msra.mxu0 0
      %327 = vmatprep.subr.bf16.mxu0 0
      %328 = vmatpush1.bf16.msra.mxu0 0
      %329 = vmatprep.subr.bf16.mxu0 0
      %330 = vmatpush1.bf16.msra.mxu0 0
      %331 = vmatprep.subr.bf16.mxu0 0
      %332 = vmatpush1.bf16.msra.mxu0 0
      %333 = vmatprep.subr.bf16.mxu0 0
      %334 = vmatpush1.bf16.msra.mxu0 0
      %335 = vmatprep.subr.bf16.mxu0 0
      %336 = vmatpush1.bf16.msra.mxu0 0
      %337 = vmatprep.subr.bf16.mxu0 0
      %338 = vmatpush1.bf16.msra.mxu0 0
      %339 = vmatprep.subr.bf16.mxu0 0
      %340 = vmatpush1.bf16.msra.mxu0 0
      %341 = vmatprep.subr.bf16.mxu0 0
      %342 = vmatpush1.bf16.msra.mxu0 0
      %343 = vmatprep.subr.bf16.mxu0 0
      %344 = vmatpush1.bf16.msra.mxu0 0
      %345 = vmatprep.subr.bf16.mxu0 0
      %346 = vmatpush1.bf16.msra.mxu0 0
      %347 = vmatprep.subr.bf16.mxu0 0
      %348 = vmatpush1.bf16.msra.mxu0 0
      %349 = vmatprep.mubr.bf16.mxu0 0
      %350 = vmatmul.mubr.bf16.gmra.mrb[0].mxu0 %v315
      %v351 = vpop.f32.mrb[0].mxu0
      %v352 = vadd.f32 %v296, %v351
      %v353 = vpop.f32.mrb[0].mxu0
      %v354 = vpop.f32.mrb[0].mxu0
      %v355 = vadd.f32 %v299, %v354
      %v356 = vpop.f32.mrb[0].mxu0
      %357 = vdwg.mxu0
      %v358 = vld [vmem:[%s206 + $0x2] sm:$0xff]
      %v359 = vld [vmem:[%s206 + $0xa] sm:$0x3]
      %v360 = vpack.c.bf16 %v359, %v358
      %v365 = vunpack.c.l.b16 %v231
      %v366 = vunpack.c.l.b16 %v232
      %v367 = vunpack.c.l.b16 %v233
      %v368 = vunpack.c.l.b16 %v234
      %v369 = vpack.c.b16 %v366, %v365
      %v370 = vpack.c.b16 %v368, %v367
      %v374 = vsel %vm257, %v360, 0
      %376 = vmatprep.subr.bf16.mxu0 0
      %377 = vmatpush1.bf16.msra.mxu0 %v369
      %378 = vmatprep.subr.bf16.mxu0 0
      %379 = vmatpush1.bf16.msra.mxu0 %v370
      %380 = vmatprep.subr.bf16.mxu0 0
      %381 = vmatpush1.bf16.msra.mxu0 0
      %382 = vmatprep.subr.bf16.mxu0 0
      %383 = vmatpush1.bf16.msra.mxu0 0
      %384 = vmatprep.subr.bf16.mxu0 0
      %385 = vmatpush1.bf16.msra.mxu0 0
      %386 = vmatprep.subr.bf16.mxu0 0
      %387 = vmatpush1.bf16.msra.mxu0 0
      %388 = vmatprep.subr.bf16.mxu0 0
      %389 = vmatpush1.bf16.msra.mxu0 0
      %390 = vmatprep.subr.bf16.mxu0 0
      %391 = vmatpush1.bf16.msra.mxu0 0
      %392 = vmatprep.subr.bf16.mxu0 0
      %393 = vmatpush1.bf16.msra.mxu0 0
      %394 = vmatprep.subr.bf16.mxu0 0
      %395 = vmatpush1.bf16.msra.mxu0 0
      %396 = vmatprep.subr.bf16.mxu0 0
      %397 = vmatpush1.bf16.msra.mxu0 0
      %398 = vmatprep.subr.bf16.mxu0 0
      %399 = vmatpush1.bf16.msra.mxu0 0
      %400 = vmatprep.subr.bf16.mxu0 0
      %401 = vmatpush1.bf16.msra.mxu0 0
      %402 = vmatprep.subr.bf16.mxu0 0
      %403 = vmatpush1.bf16.msra.mxu0 0
      %404 = vmatprep.subr.bf16.mxu0 0
      %405 = vmatpush1.bf16.msra.mxu0 0
      %406 = vmatprep.subr.bf16.mxu0 0
      %407 = vmatpush1.bf16.msra.mxu0 0
      %408 = vmatprep.mubr.bf16.mxu0 0
      %409 = vmatmul.mubr.bf16.gmra.mrb[0].mxu0 %v374
      %v410 = vpop.f32.mrb[0].mxu0
      %v411 = vadd.f32 0.0, %v410
      %v412 = vpop.f32.mrb[0].mxu0
      %v413 = vpop.f32.mrb[0].mxu0
      %v414 = vadd.f32 0.0, %v413
      %v415 = vpop.f32.mrb[0].mxu0
      %416 = vdwg.mxu0
      %v417 = vadd.f32 %v352, %v411
      %v418 = vadd.f32 %v355, %v414
      %v419 = vld [vmem:[%s206 + $0x3] sm:$0xff]
      %v420 = vld [vmem:[%s206 + $0xb] sm:$0x3]
      %v421 = vpack.c.bf16 %v420, %v419
      %v426 = vunpack.c.l.b16 %v235
      %v427 = vunpack.c.l.b16 %v236
      %v428 = vunpack.c.l.b16 %v237
      %v429 = vunpack.c.l.b16 %v238
      %v430 = vpack.c.b16 %v427, %v426
      %v431 = vpack.c.b16 %v429, %v428
      %v435 = vsel %vm257, %v421, 0
      %437 = vmatprep.subr.bf16.mxu0 0
      %438 = vmatpush1.bf16.msra.mxu0 %v430
      %439 = vmatprep.subr.bf16.mxu0 0
      %440 = vmatpush1.bf16.msra.mxu0 %v431
      %441 = vmatprep.subr.bf16.mxu0 0
      %442 = vmatpush1.bf16.msra.mxu0 0
      %443 = vmatprep.subr.bf16.mxu0 0
      %444 = vmatpush1.bf16.msra.mxu0 0
      %445 = vmatprep.subr.bf16.mxu0 0
      %446 = vmatpush1.bf16.msra.mxu0 0
      %447 = vmatprep.subr.bf16.mxu0 0
      %448 = vmatpush1.bf16.msra.mxu0 0
      %449 = vmatprep.subr.bf16.mxu0 0
      %450 = vmatpush1.bf16.msra.mxu0 0
      %451 = vmatprep.subr.bf16.mxu0 0
      %452 = vmatpush1.bf16.msra.mxu0 0
      %453 = vmatprep.subr.bf16.mxu0 0
      %454 = vmatpush1.bf16.msra.mxu0 0
      %455 = vmatprep.subr.bf16.mxu0 0
      %456 = vmatpush1.bf16.msra.mxu0 0
      %457 = vmatprep.subr.bf16.mxu0 0
      %458 = vmatpush1.bf16.msra.mxu0 0
      %459 = vmatprep.subr.bf16.mxu0 0
      %460 = vmatpush1.bf16.msra.mxu0 0
      %461 = vmatprep.subr.bf16.mxu0 0
      %462 = vmatpush1.bf16.msra.mxu0 0
      %463 = vmatprep.subr.bf16.mxu0 0
      %464 = vmatpush1.bf16.msra.mxu0 0
      %465 = vmatprep.subr.bf16.mxu0 0
      %466 = vmatpush1.bf16.msra.mxu0 0
      %467 = vmatprep.subr.bf16.mxu0 0
      %468 = vmatpush1.bf16.msra.mxu0 0
      %469 = vmatprep.mubr.bf16.mxu0 0
      %470 = vmatmul.mubr.bf16.gmra.mrb[0].mxu0 %v435
      %v471 = vpop.f32.mrb[0].mxu0
      %v472 = vadd.f32 0.0, %v471
      %v473 = vpop.f32.mrb[0].mxu0
      %v474 = vpop.f32.mrb[0].mxu0
      %v475 = vadd.f32 0.0, %v474
      %v476 = vpop.f32.mrb[0].mxu0
      %477 = vdwg.mxu0
      %v478 = vadd.f32 %v417, %v472
      %v479 = vadd.f32 %v418, %v475
      %v480 = vld [vmem:[%s213] sm:$0x1]
      %v482 = vlaneseq
      %v483 = vshrl.u32 %v482, 7
      %v484 = vsub.s32 0, %v483
      %v485 = vrot.slane %v480, %v484
      %v487 = vadd.f32 %v478, %v485
      %v488 = vadd.f32 %v479, %v485
      %v489 = vmax.f32 %v487, 0.0
      %v490 = vmax.f32 %v488, 0.0
      %v491 = vsel %vm257, %v489, 0.0
      %vm492 = vcmask 254976
      %v493 = vsel %vm492, %v490, 0.0
      %v494 = vadd.f32 %v491, %v493
      %v495 = vrot.slane %v494, 4
      %v496 = vadd.f32 %v494, %v495
      %v497 = vrot.slane %v496, 2
      %v498 = vadd.f32 %v496, %v497
      %v499 = vrot.slane %v498, 1
      %v500 = vadd.f32 %v498, %v499
      %v501 = vrcp.pop 10.0
      %v502 = vmul.f32 %v500, %v501
      %v503 = vsub.f32 %v489, %v502
      %v504 = vsub.f32 %v490, %v502
      %v505 = vmul.f32 %v503, %v503
      %v506 = vmul.f32 %v504, %v504
      %v507 = vsel %vm257, %v505, 0.0
      %v508 = vsel %vm492, %v506, 0.0
      %v509 = vadd.f32 %v507, %v508
      %v510 = vrot.slane %v509, 4
      %v511 = vadd.f32 %v509, %v510
      %v512 = vrot.slane %v511, 2
      %v513 = vadd.f32 %v511, %v512
      %v514 = vrot.slane %v513, 1
      %v515 = vadd.f32 %v513, %v514
      %v516 = vmul.f32 %v515, %v501
      %v517 = vadd.f32 %v516, 1e-05
      %v518 = vrsqrt.pop %v517
      %v519 = vmul.f32 %v503, %v518
      %v520 = vmul.f32 %v504, %v518
      %521 = vst.msk [vmem:[%s221] sm:$0xff] %vm257, %v519
      %522 = vst.msk [vmem:[%s221 + $0x8] sm:$0x3] %vm492, %v520
      %p523 = scmp.lt.s32.totalorder %s18, 1
      %s524 = scalar_select %p523, %s18, 1
      %p525 = scmp.lt.s32.totalorder %s19, 0
      %s526 = scalar_select %p525, %s19, 0
      %s527 = smul.addr %s524, 2
      %s528 = sadd.s32 %s526, %s527
      %s529 = smul.addr %s528, 8
      %s530 = scalar_lea.vmem %s3, %s529
      // Predicated region
      $region33: #{conv1d_embed_forward.6} parent=31 // pred_check
        %p531 = pneg %p124
      $region34: #{conv1d_embed_forward.6} parent=31 // pred_check_branch
        %533 = sbr.rel (%p531) target = $region36
      $region35: #{conv1d_embed_forward.6} parent=31 // pred_region
        _
      $region36: #{conv1d_embed_forward.6} parent=31 // pred_fallthru
        _
    $region32: #{conv1d_embed_forward.6} parent=5 // pred_fallthru
      _
    %p534 = scmp.le.s32.totalorder 2, %s9
    // Predicated region
    $region37: #{conv1d_embed_forward.6} parent=5 // pred_check
      %p535 = pneg %p534
    $region38: #{conv1d_embed_forward.6} parent=5 // pred_check_branch
      %537 = sbr.rel (%p535) target = $region40
    $region39: #{conv1d_embed_forward.6} parent=5 // pred_region
      %s538 = ssub.s32 %s9, 2
      // Predicated region
      $region41: #{conv1d_embed_forward.6} parent=39 // pred_check
        %p539 = pneg %p130
      $region42: #{conv1d_embed_forward.6} parent=39 // pred_check_branch
        %541 = sbr.rel (%p539) target = $region44
      $region43: #{conv1d_embed_forward.6} parent=39 // pred_region
        %p542 = scmp.lt.s32.totalorder %s20, 1
        %s543 = scalar_select %p542, %s20, 1
        %p544 = scmp.lt.s32.totalorder %s21, 0
        %s545 = scalar_select %p544, %s21, 0
        %s546 = smul.addr %s543, 2
        %s547 = sadd.s32 %s545, %s546
        %s548 = smul.addr %s547, 8
        %s549 = scalar_lea.vmem %s3, %s548
      $region44: #{conv1d_embed_forward.6} parent=39 // pred_fallthru
        _
    $region40: #{conv1d_embed_forward.6} parent=5 // pred_fallthru
      _
  $region6: #{conv1d_embed_forward.6} parent=0 // loop_footer
    %s13 = sadd.s32 1, %s9
  $region7: #{conv1d_embed_forward.6} parent=0 // loop_footer_branch
    %8 = sbr.rel target = $region3
  $region8: #{conv1d_embed_forward.6} parent=0 // loop_exit
    _

// kernel: conv1d_embed_forward.7
$region0: #{conv1d_embed_forward.7}
  #allocation0 [shape = 'u32[]', space=smem, size = 0x4, offset = 0x4, fixed_abs, tag = 'smem constant byte address 0x4 - core index']
  #allocation1 [shape = 'u32[144,128]{1,0:T(1,128)}', space=vmem, size = 0x12000, scoped, tag = 'internal scratch']
  %s0 = inlined_call_operand.vmem [shape: f32[2,10,32], index: 0, kind: input, shape index: {}]
  %s1 = inlined_call_operand.vmem [shape: bf16[2,32,64], index: 1, kind: input, shape index: {}]
  %s2 = inlined_call_operand.vmem [shape: f32[1,64], index: 2, kind: input, shape index: {}]
  %s3 = inlined_call_operand.vmem [shape: f32[8,9], index: 3, kind: input, shape index: {}]
  %s4 = inlined_call_operand.hbm [shape: f32[2,8,64], index: 4, kind: output, shape index: {}]
  %s5 = sld [smem:[#allocation0]]
  $region49: #{conv1d_embed_forward.7} parent=0
    _
  %s7 = ssub.s32 1, %s5
  %s8 = scalar_select 0, %s7, %s5
  $region1: #{conv1d_embed_forward.7} parent=0
    #allocation2 [shape = 'u8[8192]{0}', space=vmem, size = 0x2000, scoped, tag = 'output window, operand 0']
    #allocation3 [shape = 's32[2]{0}', space=sflag, size = 0x8, scoped, tag = 'scoped memory for conv1d_embed_forward.7']
    %9 = vsyncpa [#allocation3], 0
    %s10 = scalar_lea.sflag [#allocation3], 1
    %11 = vsyncpa %s10, 0
    loop: start=0, step=1, limit=4
    $region2: #{conv1d_embed_forward.7} parent=1 // loop_pre_header
      _
    $region3: #{conv1d_embed_forward.7} parent=1 // loop_header
      %s13 = sphi 0, %s17
      %p14 = scmp.ge.s32.totalorder %s13, 4
      %s20 = sphi 0, %s32
      %s21 = sphi 0, %s28
      %s22 = sphi 0, %s20
      %s23 = sphi 0, %s21
      %s24 = sphi 0, %s22
      %s25 = sphi 0, %s23
      %s35 = sphi 0, %s37
      %s38 = sphi 0, %s35
      %s39 = sphi 0, %s38
      %s55 = sphi 0, %s39
      %s61 = sphi 0, %s63
      %s64 = sphi 0, %s61
      %s65 = sphi 0, %s64
      %s81 = sphi 0, %s65
      %s87 = sphi 0, %s89
      %s90 = sphi 0, %s87
      %s91 = sphi 0, %s90
      %s107 = sphi 0, %s91
      %s111 = sphi 0, %s111
      %s113 = sphi 0, %s111
      %s114 = sphi 0, %s113
      %s128 = sphi 0, %s114
      %s136 = sphi 0, %s138
      %s139 = sphi 0, %s136
      %s140 = sphi 0, %s139
      %s156 = sphi 0, %s140
    $region4: #{conv1d_embed_forward.7} parent=1 // loop_header_branch
      %16 = sbr.rel (%p14) target = $region8
    $region5: #{conv1d_embed_forward.7} parent=1 // loop_body
      %s18 = ssub.s32 %s13, 1
      %s19 = ssub.s32 %s13, 2
      %s26 = sadd.s32 1, %s21
      %p27 = scmp.ge.s32.totalorder %s26, 1
      %s28 = scalar_select %p27, 0, %s26
      %s29 = sadd.s32 1, %s20
      %s30 = scalar_select %p27, %s29, %s20
      %p31 = scmp.ge.s32.totalorder %s30, 2
      %s32 = scalar_select %p31, 0, %s30
      %s33 = ssub.s32 %s20, %s32
      %p34 = scmp.eq.s32.totalorder %s33, 0
      %s36 = sadd.s32 %s35, 1
      %s37 = scalar_select %p34, %s35, %s36
      %p40 = pneg %p34
      %p41 = scmp.eq.s32.totalorder %s13, 1
      %p42 = por %p40, %p41
      %p43 = scmp.ne.s32.totalorder %s35, %s38
      %p44 = scmp.eq.s32.totalorder %s13, 0
      %p45 = por %p43, %p44
      %p46 = scmp.ne.s32.totalorder %s35, %s38
      %p47 = scmp.eq.s32.totalorder %s18, 1
      %p48 = por %p46, %p47
      %p49 = scmp.ne.s32.totalorder %s38, %s39
      %p50 = scmp.eq.s32.totalorder %s18, 0
      %p51 = por %p49, %p50
      %p52 = scmp.ne.s32.totalorder %s38, %s39
      %p53 = scmp.eq.s32.totalorder %s19, 1
      %p54 = por %p52, %p53
      %p56 = scmp.ne.s32.totalorder %s39, %s55
      %p57 = scmp.eq.s32.totalorder %s19, 0
      %p58 = por %p56, %p57
      %s59 = ssub.s32 %s21, %s28
      %p60 = scmp.eq.s32.totalorder %s59, 0
      %s62 = sadd.s32 %s61, 1
      %s63 = scalar_select %p60, %s61, %s62
      %p66 = pneg %p60
      %p67 = scmp.eq.s32.totalorder %s13, 1
      %p68 = por %p66, %p67
      %p69 = scmp.ne.s32.totalorder %s61, %s64
      %p70 = scmp.eq.s32.totalorder %s13, 0
      %p71 = por %p69, %p70
      %p72 = scmp.ne.s32.totalorder %s61, %s64
      %p73 = scmp.eq.s32.totalorder %s18, 1
      %p74 = por %p72, %p73
      %p75 = scmp.ne.s32.totalorder %s64, %s65
      %p76 = scmp.eq.s32.totalorder %s18, 0
      %p77 = por %p75, %p76
      %p78 = scmp.ne.s32.totalorder %s64, %s65
      %p79 = scmp.eq.s32.totalorder %s19, 1
      %p80 = por %p78, %p79
      %p82 = scmp.ne.s32.totalorder %s65, %s81
      %p83 = scmp.eq.s32.totalorder %s19, 0
      %p84 = por %p82, %p83
      %s85 = ssub.s32 %s21, %s28
      %p86 = scmp.eq.s32.totalorder %s85, 0
      %s88 = sadd.s32 %s87, 1
      %s89 = scalar_select %p86, %s87, %s88
      %p92 = pneg %p86
      %p93 = scmp.eq.s32.totalorder %s13, 1
      %p94 = por %p92, %p93
      %p95 = scmp.ne.s32.totalorder %s87, %s90
      %p96 = scmp.eq.s32.totalorder %s13, 0
      %p97 = por %p95, %p96
      %p98 = scmp.ne.s32.totalorder %s87, %s90
      %p99 = scmp.eq.s32.totalorder %s18, 1
      %p100 = por %p98, %p99
      %p101 = scmp.ne.s32.totalorder %s90, %s91
      %p102 = scmp.eq.s32.totalorder %s18, 0
      %p103 = por %p101, %p102
      %p104 = scmp.ne.s32.totalorder %s90, %s91
      %p105 = scmp.eq.s32.totalorder %s19, 1
      %p106 = por %p104, %p105
      %p108 = scmp.ne.s32.totalorder %s91, %s107
      %p109 = scmp.eq.s32.totalorder %s19, 0
      %p110 = por %p108, %p109
      %s112 = sadd.s32 %s111, 1
      %p115 = scmp.eq.s32.totalorder %s13, 1
      %p116 = scmp.ne.s32.totalorder %s111, %s113
      %p117 = scmp.eq.s32.totalorder %s13, 0
      %p118 = por %p116, %p117
      %p119 = scmp.ne.s32.totalorder %s111, %s113
      %p120 = scmp.eq.s32.totalorder %s18, 1
      %p121 = por %p119, %p120
      %p122 = scmp.ne.s32.totalorder %s113, %s114
      %p123 = scmp.eq.s32.totalorder %s18, 0
      %p124 = por %p122, %p123
      %p125 = scmp.ne.s32.totalorder %s113, %s114
      %p126 = scmp.eq.s32.totalorder %s19, 1
      %p127 = por %p125, %p126
      %p129 = scmp.ne.s32.totalorder %s114, %s128
      %p130 = scmp.eq.s32.totalorder %s19, 0
      %p131 = por %p129, %p130
      %s132 = ssub.s32 %s20, %s32
      %s133 = ssub.s32 %s21, %s28
      %s134 = sor.u32 %s132, %s133
      %p135 = scmp.eq.s32.totalorder %s134, 0
      %s137 = sadd.s32 %s136, 1
      %s138 = scalar_select %p135, %s136, %s137
      %p141 = pneg %p135
      %p142 = scmp.eq.s32.totalorder %s13, 1
      %p143 = por %p141, %p142
      %p144 = scmp.ne.s32.totalorder %s136, %s139
      %p145 = scmp.eq.s32.totalorder %s13, 0
      %p146 = por %p144, %p145
      %p147 = scmp.ne.s32.totalorder %s136, %s139
      %p148 = scmp.eq.s32.totalorder %s18, 1
      %p149 = por %p147, %p148
      %p150 = scmp.ne.s32.totalorder %s139, %s140
      %p151 = scmp.eq.s32.totalorder %s18, 0
      %p152 = por %p150, %p151
      %p153 = scmp.ne.s32.totalorder %s139, %s140
      %p154 = scmp.eq.s32.totalorder %s19, 1
      %p155 = por %p153, %p154
      %p157 = scmp.ne.s32.totalorder %s140, %s156
      %p158 = scmp.eq.s32.totalorder %s19, 0
      %p159 = por %p157, %p158
      %p160 = scmp.le.s32.totalorder 1, %s13
      %p161 = scmp.lt.s32.totalorder %s13, 3
      %p162 = pnand %p160, %p161
      %p163 = pneg %p162
      // Predicated region
      $region9: #{conv1d_embed_forward.7} parent=5 // pred_check
        _
      $region10: #{conv1d_embed_forward.7} parent=5 // pred_check_branch
        %165 = sbr.rel (%p162) target = $region12
      $region11: #{conv1d_embed_forward.7} parent=5 // pred_region
        %s166 = ssub.s32 %s13, 1
        // Predicated region
        $region13: #{conv1d_embed_forward.7} parent=11 // pred_check
          %p167 = pneg %p77
        $region14: #{conv1d_embed_forward.7} parent=11 // pred_check_branch
          %169 = sbr.rel (%p167) target = $region16
        $region15: #{conv1d_embed_forward.7} parent=11 // pred_region
          %p170 = scmp.lt.s32.totalorder %s23, 0
          %s171 = scalar_select %p170, %s23, 0
          %s172 = smul.addr %s171, 4
          %s173 = scalar_lea.vmem %s1, %s172
        $region16: #{conv1d_embed_forward.7} parent=11 // pred_fallthru
          _
        // Predicated region
        $region17: #{conv1d_embed_forward.7} parent=11 // pred_check
          %p174 = pneg %p103
        $region18: #{conv1d_embed_forward.7} parent=11 // pred_check_branch
          %176 = sbr.rel (%p174) target = $region20
        $region19: #{conv1d_embed_forward.7} parent=11 // pred_region
          %p177 = scmp.lt.s32.totalorder %s23, 0
          %s178 = scalar_select %p177, %s23, 0
          %s179 = scalar_lea.vmem %s2, %s178
        $region20: #{conv1d_embed_forward.7} parent=11 // pred_fallthru
          _
        // Predicated region
        $region21: #{conv1d_embed_forward.7} parent=11 // pred_check
          %p180 = pneg %p124
        $region22: #{conv1d_embed_forward.7} parent=11 // pred_check_branch
          %182 = sbr.rel (%p180) target = $region24
        $region23: #{conv1d_embed_forward.7} parent=11 // pred_region
          _
        $region24: #{conv1d_embed_forward.7} parent=11 // pred_fallthru
          _
      $region12: #{conv1d_embed_forward.7} parent=5 // pred_fallthru
        _
      %p183 = scmp.lt.s32.totalorder %s13, 2
      // Predicated region
      $region25: #{conv1d_embed_forward.7} parent=5 // pred_check
        %p184 = pneg %p183
      $region26: #{conv1d_embed_forward.7} parent=5 // pred_check_branch
        %186 = sbr.rel (%p184) target = $region28
      $region27: #{conv1d_embed_forward.7} parent=5 // pred_region
        // Predicated region
        $region29: #{conv1d_embed_forward.7} parent=27 // pred_check
          %p187 = pneg %p45
        $region30: #{conv1d_embed_forward.7} parent=27 // pred_check_branch
          %189 = sbr.rel (%p187) target = $region32
        $region31: #{conv1d_embed_forward.7} parent=27 // pred_region
          %p190 = scmp.lt.s32.totalorder %s20, 1
          %s191 = scalar_select %p190, %s20, 1
          %s192 = smul.addr %s191, 2
          %s193 = smul.addr %s192, 8
          %s194 = scalar_lea.vmem %s0, %s193
        $region32: #{conv1d_embed_forward.7} parent=27 // pred_fallthru
          _
      $region28: #{conv1d_embed_forward.7} parent=5 // pred_fallthru
        _
      %p195 = scmp.le.s32.totalorder 1, %s13
      %p196 = scmp.lt.s32.totalorder %s13, 3
      %p197 = pnand %p195, %p196
      %p198 = pneg %p197
      // Predicated region
      $region33: #{conv1d_embed_forward.7} parent=5 // pred_check
        _
      $region34: #{conv1d_embed_forward.7} parent=5 // pred_check_branch
        %200 = sbr.rel (%p197) target = $region36
      $region35: #{conv1d_embed_forward.7} parent=5 // pred_region
        %s201 = ssub.s32 %s13, 1
        %p202 = scmp.lt.s32.totalorder %s22, 1
        %s203 = scalar_select %p202, %s22, 1
        %s204 = smul.addr %s203, 2
        %s205 = smul.addr %s204, 8
        %s206 = scalar_lea.vmem %s0, %s205
        %p207 = pneg %p51
        %p208 = pneg %p48
        %p209 = scmp.lt.s32.totalorder %s23, 0
        %s210 = scalar_select %p209, %s23, 0
        %s211 = smul.addr %s210, 4
        %s212 = scalar_lea.vmem %s1, %s211
        %p213 = pneg %p77
        %p214 = pneg %p74
        %p215 = scmp.lt.s32.totalorder %s23, 0
        %s216 = scalar_select %p215, %s23, 0
        %s217 = scalar_lea.vmem %s2, %s216
        %p218 = pneg %p103
        %p219 = pneg %p100
        %p220 = pneg %p124
        %p221 = pneg %p121
        %p222 = pneg %p152
        %p223 = pneg %p149
        %s224 = sand.u32 %s139, 1
        %s225 = scalar_lea.sflag [#allocation3], %s224
        %s226 = sand.u32 %s139, 1
        %s227 = smul.addr %s226, 8
        %s228 = scalar_lea.vmem [#allocation2], %s227
        %p229 = scmp.lt.s32.totalorder %s22, 1
        %s230 = scalar_select %p229, %s22, 1
        %s231 = smul.addr %s230, 2
        %s232 = smul.addr %s231, 8
        %s233 = scalar_lea.vmem %s0, %s232
        %p234 = scmp.lt.s32.totalorder %s23, 0
        %s235 = scalar_select %p234, %s23, 0
        %s236 = smul.addr %s235, 4
        %s237 = scalar_lea.vmem %s1, %s236
        %p238 = scmp.lt.s32.totalorder %s23, 0
        %s239 = scalar_select %p238, %s23, 0
        %s240 = scalar_lea.vmem %s2, %s239
        %v242 = vld [vmem:[%s237] sm:$0xf]
        %v243 = vld [vmem:[%s237 + $0x4] sm:$0xf]
        %v244 = vld [vmem:[%s237 + $0x8] sm:$0xf]
        %v245 = vld [vmem:[%s237 + $0xc] sm:$0xf]
        %v246 = vld [vmem:[%s237 + $0x10] sm:$0xf]
        %v247 = vld [vmem:[%s237 + $0x14] sm:$0xf]
        %v248 = vld [vmem:[%s237 + $0x18] sm:$0xf]
        %v249 = vld [vmem:[%s237 + $0x1c] sm:$0xf]
        %v250 = vld [vmem:[%s233] sm:$0xff]
        %v251 = vld [vmem:[%s233 + $0x8] sm:$0x1]
        %v252 = vpack.c.bf16 %v251, %v250
        %v253 = vld [vmem:[%s233 + $0x1] sm:$0xff]
        %v254 = vld [vmem:[%s233 + $0x9] sm:$0x1]
        %v255 = vpack.c.bf16 %v254, %v253
        %v260 = vunpack.c.l.b16 %v246
        %v261 = vunpack.c.l.b16 %v247
        %v262 = vunpack.c.l.b16 %v248
        %v263 = vunpack.c.l.b16 %v249
        %v264 = vpack.c.b16 %v261, %v260
        %v265 = vpack.c.b16 %v263, %v262
        %vm268 = vcmask 261120
        %v270 = vsel %vm268, %v255, 0
        %272 = vmatprep.subr.bf16.mxu0 0
        %273 = vmatpush1.bf16.msra.mxu0 %v264
        %274 = vmatprep.subr.bf16.mxu0 0
        %275 = vmatpush1.bf16.msra.mxu0 %v265
        %276 = vmatprep.subr.bf16.mxu0 0
        %277 = vmatpush1.bf16.msra.mxu0 0
        %278 = vmatprep.subr.bf16.mxu0 0
        %279 = vmatpush1.bf16.msra.mxu0 0
        %280 = vmatprep.subr.bf16.mxu0 0
        %281 = vmatpush1.bf16.msra.mxu0 0
        %282 = vmatprep.subr.bf16.mxu0 0
        %283 = vmatpush1.bf16.msra.mxu0 0
        %284 = vmatprep.subr.bf16.mxu0 0
        %285 = vmatpush1.bf16.msra.mxu0 0
        %286 = vmatprep.subr.bf16.mxu0 0
        %287 = vmatpush1.bf16.msra.mxu0 0
        %288 = vmatprep.subr.bf16.mxu0 0
        %289 = vmatpush1.bf16.msra.mxu0 0
        %290 = vmatprep.subr.bf16.mxu0 0
        %291 = vmatpush1.bf16.msra.mxu0 0
        %292 = vmatprep.subr.bf16.mxu0 0
        %293 = vmatpush1.bf16.msra.mxu0 0
        %294 = vmatprep.subr.bf16.mxu0 0
        %295 = vmatpush1.bf16.msra.mxu0 0
        %296 = vmatprep.subr.bf16.mxu0 0
        %297 = vmatpush1.bf16.msra.mxu0 0
        %298 = vmatprep.subr.bf16.mxu0 0
        %299 = vmatpush1.bf16.msra.mxu0 0
        %300 = vmatprep.subr.bf16.mxu0 0
        %301 = vmatpush1.bf16.msra.mxu0 0
        %302 = vmatprep.subr.bf16.mxu0 0
        %303 = vmatpush1.bf16.msra.mxu0 0
        %304 = vmatprep.mubr.bf16.mxu0 0
        %305 = vmatmul.mubr.bf16.gmra.mrb[0].mxu0 %v270
        %v306 = vpop.f32.mrb[0].mxu0
        %v307 = vadd.f32 0.0, %v306
        %v308 = vpop.f32.mrb[0].mxu0
        %v309 = vpop.f32.mrb[0].mxu0
        %v310 = vadd.f32 0.0, %v309
        %v311 = vpop.f32.mrb[0].mxu0
        %312 = vdwg.mxu0
        %v317 = vunpack.c.l.b16 %v242
        %v318 = vunpack.c.l.b16 %v243
        %v319 = vunpack.c.l.b16 %v244
        %v320 = vunpack.c.l.b16 %v245
        %v321 = vpack.c.b16 %v318, %v317
        %v322 = vpack.c.b16 %v320, %v319
        %v326 = vsel %vm268, %v252, 0
        %328 = vmatprep.subr.bf16.mxu0 0
        %329 = vmatpush1.bf16.msra.mxu0 %v321
        %330 = vmatprep.subr.bf16.mxu0 0
        %331 = vmatpush1.bf16.msra.mxu0 %v322
        %332 = vmatprep.subr.bf16.mxu0 0
        %333 = vmatpush1.bf16.msra.mxu0 0
        %334 = vmatprep.subr.bf16.mxu0 0
        %335 = vmatpush1.bf16.msra.mxu0 0
        %336 = vmatprep.subr.bf16.mxu0 0
        %337 = vmatpush1.bf16.msra.mxu0 0
        %338 = vmatprep.subr.bf16.mxu0 0
        %339 = vmatpush1.bf16.msra.mxu0 0
        %340 = vmatprep.subr.bf16.mxu0 0
        %341 = vmatpush1.bf16.msra.mxu0 0
        %342 = vmatprep.subr.bf16.mxu0 0
        %343 = vmatpush1.bf16.msra.mxu0 0
        %344 = vmatprep.subr.bf16.mxu0 0
        %345 = vmatpush1.bf16.msra.mxu0 0
        %346 = vmatprep.subr.bf16.mxu0 0
        %347 = vmatpush1.bf16.msra.mxu0 0
        %348 = vmatprep.subr.bf16.mxu0 0
        %349 = vmatpush1.bf16.msra.mxu0 0
        %350 = vmatprep.subr.bf16.mxu0 0
        %351 = vmatpush1.bf16.msra.mxu0 0
        %352 = vmatprep.subr.bf16.mxu0 0
        %353 = vmatpush1.bf16.msra.mxu0 0
        %354 = vmatprep.subr.bf16.mxu0 0
        %355 = vmatpush1.bf16.msra.mxu0 0
        %356 = vmatprep.subr.bf16.mxu0 0
        %357 = vmatpush1.bf16.msra.mxu0 0
        %358 = vmatprep.subr.bf16.mxu0 0
        %359 = vmatpush1.bf16.msra.mxu0 0
        %360 = vmatprep.mubr.bf16.mxu0 0
        %361 = vmatmul.mubr.bf16.gmra.mrb[0].mxu0 %v326
        %v362 = vpop.f32.mrb[0].mxu0
        %v363 = vadd.f32 %v307, %v362
        %v364 = vpop.f32.mrb[0].mxu0
        %v365 = vpop.f32.mrb[0].mxu0
        %v366 = vadd.f32 %v310, %v365
        %v367 = vpop.f32.mrb[0].mxu0
        %368 = vdwg.mxu0
        %v369 = vld [vmem:[%s240] sm:$0x1]
        %v371 = vlaneseq
        %v372 = vshrl.u32 %v371, 7
        %v373 = vsub.s32 0, %v372
        %v374 = vrot.slane %v369, %v373
        %v376 = vadd.f32 %v363, %v374
        %v377 = vadd.f32 %v366, %v374
        %v378 = vmax.f32 %v376, 0.0
        %v379 = vmax.f32 %v377, 0.0
        %vm380 = vcmask 523264
        %v381 = vsel %vm380, %v378, 0.0
        %vm382 = vcmask 516096
        %v383 = vsel %vm382, %v379, 0.0
        %v384 = vadd.f32 %v381, %v383
        %v385 = vrot.slane %v384, 4
        %v386 = vadd.f32 %v384, %v385
        %v387 = vrot.slane %v386, 2
        %v388 = vadd.f32 %v386, %v387
        %v389 = vrot.slane %v388, 1
        %v390 = vadd.f32 %v388, %v389
        %v391 = vrcp.pop 9.0
        %v392 = vmul.f32 %v390, %v391
        %v393 = vsub.f32 %v378, %v392
        %v394 = vsub.f32 %v379, %v392
        %v395 = vmul.f32 %v393, %v393
        %v396 = vmul.f32 %v394, %v394
        %v397 = vsel %vm380, %v395, 0.0
        %v398 = vsel %vm382, %v396, 0.0
        %v399 = vadd.f32 %v397, %v398
        %v400 = vrot.slane %v399, 4
        %v401 = vadd.f32 %v399, %v400
        %v402 = vrot.slane %v401, 2
        %v403 = vadd.f32 %v401, %v402
        %v404 = vrot.slane %v403, 1
        %v405 = vadd.f32 %v403, %v404
        %v406 = vmul.f32 %v405, %v391
        %v407 = vadd.f32 %v406, 1e-05
        %v408 = vrsqrt.pop %v407
        %v409 = vmul.f32 %v393, %v408
        %v410 = vmul.f32 %v394, %v408
        %v411 = vld [vmem:[%s3] sm:$0xff]
        %vm412 = vcmask 72704
        %v414 = vsel %vm412, %v411, 0
        %vm416 = vcmask 1040384
        %v418 = vsel %vm416, %v410, 0
        %420 = vmatprep.subr.mxu0 0.0
        %421 = vmatpush1.msra.mxu0 %v409
        %422 = vmatprep.subr.mxu0 0.0
        %423 = vmatpush1.msra.mxu0 %v418
        %424 = vmatprep.subr.mxu0 0.0
        %425 = vmatpush1.msra.mxu0 0.0
        %426 = vmatprep.subr.mxu0 0.0
        %427 = vmatpush1.msra.mxu0 0.0
        %428 = vmatprep.subr.mxu0 0.0
        %429 = vmatpush1.msra.mxu0 0.0
        %430 = vmatprep.subr.mxu0 0.0
        %431 = vmatpush1.msra.mxu0 0.0
        %432 = vmatprep.subr.mxu0 0.0
        %433 = vmatpush1.msra.mxu0 0.0
        %434 = vmatprep.subr.mxu0 0.0
        %435 = vmatpush1.msra.mxu0 0.0
        %436 = vmatprep.subr.mxu0 0.0
        %437 = vmatpush1.msra.mxu0 0.0
        %438 = vmatprep.subr.mxu0 0.0
        %439 = vmatpush1.msra.mxu0 0.0
        %440 = vmatprep.subr.mxu0 0.0
        %441 = vmatpush1.msra.mxu0 0.0
        %442 = vmatprep.subr.mxu0 0.0
        %443 = vmatpush1.msra.mxu0 0.0
        %444 = vmatprep.subr.mxu0 0.0
        %445 = vmatpush1.msra.mxu0 0.0
        %446 = vmatprep.subr.mxu0 0.0
        %447 = vmatpush1.msra.mxu0 0.0
        %448 = vmatprep.subr.mxu0 0.0
        %449 = vmatpush1.msra.mxu0 0.0
        %450 = vmatprep.subr.mxu0 0.0
        %451 = vmatpush1.msra.mxu0 0.0
        %452 = vmatprep.subr.mxu0 0.0
        %453 = vmatpush1.msra.mxu0 0.0
        %454 = vmatprep.subr.mxu0 0.0
        %455 = vmatpush1.msra.mxu0 0.0
        %456 = vmatprep.subr.mxu0 0.0
        %457 = vmatpush1.msra.mxu0 0.0
        %458 = vmatprep.subr.mxu0 0.0
        %459 = vmatpush1.msra.mxu0 0.0
        %460 = vmatprep.subr.mxu0 0.0
        %461 = vmatpush1.msra.mxu0 0.0
        %462 = vmatprep.subr.mxu0 0.0
        %463 = vmatpush1.msra.mxu0 0.0
        %464 = vmatprep.subr.mxu0 0.0
        %465 = vmatpush1.msra.mxu0 0.0
        %466 = vmatprep.subr.mxu0 0.0
        %467 = vmatpush1.msra.mxu0 0.0
        %468 = vmatprep.subr.mxu0 0.0
        %469 = vmatpush1.msra.mxu0 0.0
        %470 = vmatprep.subr.mxu0 0.0
        %471 = vmatpush1.msra.mxu0 0.0
        %472 = vmatprep.subr.mxu0 0.0
        %473 = vmatpush1.msra.mxu0 0.0
        %474 = vmatprep.subr.mxu0 0.0
        %475 = vmatpush1.msra.mxu0 0.0
        %476 = vmatprep.subr.mxu0 0.0
        %477 = vmatpush1.msra.mxu0 0.0
        %478 = vmatprep.subr.mxu0 0.0
        %479 = vmatpush1.msra.mxu0 0.0
        %480 = vmatprep.subr.mxu0 0.0
        %481 = vmatpush1.msra.mxu0 0.0
        %482 = vmatprep.subr.mxu0 0.0
        %483 = vmatpush1.msra.mxu0 0.0
        %484 = vmatprep.mubr.f32.mxu0 0.0
        %485 = vmatmul.mubr.f32.gmra.mrb[0].mxu0 %v414
        %v486 = vpop.f32.mrb[0].mxu0
        %v487 = vadd.f32 0.0, %v486
        %v488 = vpop.f32.mrb[0].mxu0
        %489 = vdwg.mxu0
        %490 = vst.msk [vmem:[%s228] sm:$0xff] %vm380, %v487
        %s491 = sand.u32 %s139, 1
        %s492 = scalar_lea.sflag [#allocation3], %s491
        %s493 = sand.u32 %s139, 1
        %s494 = smul.addr %s493, 8
        %s495 = scalar_lea.vmem [#allocation2], %s494
        // Predicated region
        $region37: #{conv1d_embed_forward.7} parent=35 // pred_check
          %p496 = pneg %p149
        $region38: #{conv1d_embed_forward.7} parent=35 // pred_check_branch
          %498 = sbr.rel (%p496) target = $region40
        $region39: #{conv1d_embed_forward.7} parent=35 // pred_region
          %s500 = ssub.s32 128, 128
          %501 = vsyncadd %s492, %s500
          %s502 = sadd.s32 %s23, %s22
          %s503 = smul.addr %s502, 128
          %s504 = scalar_lea.hbm %s4, %s503
          %s506 = sshll.u32 %s495, 4
          %s507 = int_to_ptr.vmem [resolvable:$true] %s506
          %509 = dma.vmem_to_hbm [thread:$0]  %s507, 128, %s504, %s492
        $region40: #{conv1d_embed_forward.7} parent=35 // pred_fallthru
          _
      $region36: #{conv1d_embed_forward.7} parent=5 // pred_fallthru
        _
      %p510 = scmp.le.s32.totalorder 2, %s13
      // Predicated region
      $region41: #{conv1d_embed_forward.7} parent=5 // pred_check
        %p511 = pneg %p510
      $region42: #{conv1d_embed_forward.7} parent=5 // pred_check_branch
        %513 = sbr.rel (%p511) target = $region44
      $region43: #{conv1d_embed_forward.7} parent=5 // pred_region
        %s514 = ssub.s32 %s13, 2
        // Predicated region
        $region45: #{conv1d_embed_forward.7} parent=43 // pred_check
          %p515 = pneg %p155
        $region46: #{conv1d_embed_forward.7} parent=43 // pred_check_branch
          %517 = sbr.rel (%p515) target = $region48
        $region47: #{conv1d_embed_forward.7} parent=43 // pred_region
          %s518 = sand.u32 %s140, 1
          %s519 = scalar_lea.sflag [#allocation3], %s518
          %s520 = sand.u32 %s140, 1
          %s521 = smul.addr %s520, 8
          %s522 = scalar_lea.vmem [#allocation2], %s521
          %523 = dma.done %s519, 128
        $region48: #{conv1d_embed_forward.7} parent=43 // pred_fallthru
          _
      $region44: #{conv1d_embed_forward.7} parent=5 // pred_fallthru
        _
    $region6: #{conv1d_embed_forward.7} parent=1 // loop_footer
      %s17 = sadd.s32 1, %s13
    $region7: #{conv1d_embed_forward.7} parent=1 // loop_footer_branch
      %12 = sbr.rel target = $region3
    $region8: #{conv1d_embed_forward.7} parent=1 // loop_exit
      _
    %524 = vsyncpa [#allocation3], 1
    %s525 = scalar_lea.sflag [#allocation3], 1
    %526 = vsyncpa %s525, 1

</llo_original>
